<compile_context>
chip_gen: v5e
topology: v5e:2x2
jax: 0.10.0
libtpu: 0.0.40
codegen_flags: <defaults>
</compile_context>

<pallas_src>
import functools
import math

import jax
import jax.numpy as jnp
from jax.experimental import pallas as pl
from jax.experimental.pallas import tpu as pltpu

MIN_NORM = 1e-15
PROJ_EPS = 4e-3                      # float32 boundary eps of PoincareBall.proj
_TAN_CAP = math.atanh(1.0 - PROJ_EPS)  # tangent-space norm cap (x sqrt(c)^-1)


# ----------------------------- manifold math (traced inside the kernel) -------

def _artanh(x):
    x = jnp.clip(x, -1.0 + 1e-7, 1.0 - 1e-7)
    return 0.5 * (jnp.log(1.0 + x) - jnp.log(1.0 - x))


def _norm_last(x):
    return jnp.maximum(jnp.sqrt(jnp.sum(x * x, axis=-1, keepdims=True)), MIN_NORM)


def _proj(x, c):
    norm = _norm_last(x)
    maxnorm = (1.0 - PROJ_EPS) / jnp.sqrt(c)
    scaled = x * (maxnorm * pl.reciprocal(norm, approx=True))
    return jnp.where(norm > maxnorm, scaled, x)


def _clamp_tan(u, c):
    """Exact equivalent of logmap0(proj(expmap0(u, c), c), c): clamp ||u||."""
    norm = _norm_last(u)
    cap = _TAN_CAP / jnp.sqrt(c)
    scaled = u * (cap * pl.reciprocal(norm, approx=True))
    return jnp.where(norm > cap, scaled, u)


def _expmap0(u, c):
    sqrt_c = jnp.sqrt(c)
    u_norm = _norm_last(u)
    return jnp.tanh(sqrt_c * u_norm) * u * pl.reciprocal(sqrt_c * u_norm, approx=True)


def _logmap0(p, c):
    sqrt_c = jnp.sqrt(c)
    p_norm = _norm_last(p)
    scale = _artanh(sqrt_c * p_norm) * pl.reciprocal(sqrt_c * p_norm, approx=True)
    return scale * p


def _mobius_add(x, y, c):
    x2 = jnp.sum(x * x, axis=-1, keepdims=True)
    y2 = jnp.sum(y * y, axis=-1, keepdims=True)
    xy = jnp.sum(x * y, axis=-1, keepdims=True)
    num = (1.0 + 2.0 * c * xy + c * y2) * x + (1.0 - c * x2) * y
    denom = 1.0 + 2.0 * c * xy + c * c * x2 * y2
    return num * pl.reciprocal(jnp.maximum(denom, MIN_NORM), approx=True)


def _mobius_matvec(x, w, c):
    sqrt_c = jnp.sqrt(c)
    x_norm = _norm_last(x)
    mx = jnp.dot(x, w, preferred_element_type=jnp.float32)
    mx_norm = _norm_last(mx)
    ratio = mx_norm * pl.reciprocal(x_norm, approx=True)
    res = (jnp.tanh(ratio * _artanh(sqrt_c * x_norm)) * mx
           * pl.reciprocal(mx_norm * sqrt_c, approx=True))
    zero_row = jnp.sum(jnp.abs(mx), axis=-1, keepdims=True) == 0.0
    return jnp.where(zero_row, jnp.zeros_like(res), res)


# --------------------------------- fused kernel --------------------------------

def shan_fused_kernel(c_ref, feat_ref, w_enc_ref, b_enc_ref, adjs_ref,
                      attn_s_ref, attn_c_ref, w_dec_ref, b_dec_ref, out_ref,
                      *, num_graphs, n_nodes):
    c = c_ref[0]

    # 1) Euclidean features -> Poincare ball
    x_hyp = _proj(_expmap0(feat_ref[...], c), c)

    # 2) HypLinear — adjacency independent, computed ONCE and shared
    res = _proj(_mobius_matvec(x_hyp, w_enc_ref[...], c), c)
    hyp_bias = _proj(_expmap0(b_enc_ref[...], c), c)
    res = _proj(_mobius_add(res, hyp_bias, c), c)
    xt = _logmap0(res, c)                               # shared tangent (N, D)

    # 3) HypAgg for graph + all homo graphs in ONE MXU matmul.
    #    adjs_ref is the stacked ((G+1)*N, N) adjacency in bf16 (f32 acc).
    support = jnp.dot(adjs_ref[...], xt.astype(jnp.bfloat16),
                      preferred_element_type=jnp.float32)
    # HypAct(ReLU) in tangent space; expmap0->logmap0 round trips replaced by
    # the equivalent tangent-norm clamp.
    t_all = jnp.maximum(_clamp_tan(support, c), 0.0)    # ((G+1)*N, D)
    t_graph = t_all[0:n_nodes, :]                       # full-graph tangent

    if num_graphs > 1:
        g_homo = num_graphs - 1
        attn_s = attn_s_ref[...]                        # (1, D)

        # --- simplex-level attention over homo-graph tangents ---
        logits = []
        for g in range(g_homo):
            t_g = t_all[(g + 1) * n_nodes:(g + 2) * n_nodes, :]
            logits.append(jnp.sum(jnp.max(t_g, axis=0, keepdims=True) * attn_s))
        m = logits[0]
        for g in range(1, g_homo):
            m = jnp.maximum(m, logits[g])
        exps = [jnp.exp(l - m) for l in logits]
        den = exps[0]
        for g in range(1, g_homo):
            den = den + exps[g]
        h_homo_t = jnp.zeros_like(t_graph)
        for g in range(g_homo):
            t_g = t_all[(g + 1) * n_nodes:(g + 2) * n_nodes, :]
            h_homo_t = h_homo_t + t_g * (exps[g] / den)
        hh_t = _clamp_tan(h_homo_t, c)

        # --- complex-level attention (full graph vs fused homo graphs) ---
        attn_c = attn_c_ref[...]                        # (1, D)
        l0 = jnp.sum(jnp.max(t_graph, axis=0, keepdims=True) * attn_c)
        l1 = jnp.sum(jnp.max(hh_t, axis=0, keepdims=True) * attn_c)
        mm = jnp.maximum(l0, l1)
        e0 = jnp.exp(l0 - mm)
        e1 = jnp.exp(l1 - mm)
        dd = e0 + e1
        out_t = t_graph * (e0 / dd) + hh_t * (e1 / dd)
        final_t = _clamp_tan(out_t, c)
    else:
        final_t = _clamp_tan(t_graph, c)

    # 4) LinearDecoder: logits = tangent @ W_dec + b_dec  (lane-padded to 128)
    out_ref[...] = (jnp.dot(final_t, w_dec_ref[...],
                            preferred_element_type=jnp.float32) + b_dec_ref[...])


# ------------------------------ pallas_call glue -------------------------------

def _zero_index(nd, i):
    return (0,) * nd


def _full_spec(shape):
    return pl.BlockSpec(shape, functools.partial(_zero_index, len(shape)))


def shan_forward(params, features, graph, graph_homos):
    """features: (N, feat_dim), graph: (N, N), graph_homos: (G, N, N)."""
    f32 = jnp.float32
    n = features.shape[0]
    n_classes = params["w_dec"].shape[1]
    num_homos = 0 if graph_homos is None else int(graph_homos.shape[0])
    num_graphs = 1 + num_homos

    c_arr = jnp.asarray(params["c"], f32).reshape((1,))   # SMEM scalar

    # Stack graph + homo graphs, flatten leading dims -> one aggregation matmul.
    if num_homos:
        adjs = jnp.concatenate([graph[None], graph_homos], axis=0)
    else:
        adjs = graph[None]
    adjs2d = adjs.reshape(num_graphs * n, n).astype(jnp.bfloat16)

    # Lane-dense decoder output: pad class dim to a multiple of 128.
    pad_classes = ((n_classes + 127) // 128) * 128
    w_dec = jnp.pad(params["w_dec"], ((0, 0), (0, pad_classes - n_classes)))
    b_dec = jnp.pad(params["b_dec"], ((0, 0), (0, pad_classes - n_classes)))

    attn_s = params["attn_simplex"].T    # (D, 1) -> (1, D)
    attn_c = params["attn_complex"].T

    vmem_args = [features.astype(f32), params["w_enc"], params["b_enc"],
                 adjs2d, attn_s, attn_c, w_dec, b_dec]

    kernel = functools.partial(shan_fused_kernel,
                               num_graphs=num_graphs, n_nodes=n)

    out_padded = pl.pallas_call(
        kernel,
        grid=(1,),
        in_specs=[pl.BlockSpec(memory_space=pltpu.MemorySpace.SMEM)]
                 + [_full_spec(a.shape) for a in vmem_args],
        out_specs=_full_spec((n, pad_classes)),
        out_shape=jax.ShapeDtypeStruct((n, pad_classes), f32),
        compiler_params=pltpu.CompilerParams(
            dimension_semantics=("arbitrary",)),
    )(c_arr, *vmem_args)

    return out_padded[:, :n_classes]


# ----------------------------------- main ---------------------------------------

def _xavier_normal(key, shape, gain=1.0):
    fan_in, fan_out = shape[0], shape[1]
    std = gain * math.sqrt(2.0 / (fan_in + fan_out))
    return std * jax.random.normal(key, shape, dtype=jnp.float32)


def _make_adj(key, n):
    a = (jax.random.uniform(key, (n, n)) < 0.4).astype(jnp.float32)
    a = jnp.maximum(a, a.T)
    a = jnp.minimum(a + jnp.eye(n, dtype=jnp.float32), 1.0)
    deg = jnp.sum(a, axis=1, keepdims=True)
    return a / deg


if __name__ == "__main__":
    N, FEAT_DIM, DIM, HEADS, N_CLASSES, G = 8, 16, 32, 1, 4, 3

    key = jax.random.PRNGKey(0)
    keys = jax.random.split(key, 10)
    relu_gain = math.sqrt(2.0)

    params = {
        "c": jnp.ones((1,), jnp.float32),
        "w_enc": _xavier_normal(keys[0], (FEAT_DIM, DIM)),
        "b_enc": jnp.zeros((1, DIM), jnp.float32),
        "w_dec": _xavier_normal(keys[1], (DIM * HEADS, N_CLASSES)),
        "b_dec": jnp.zeros((1, N_CLASSES), jnp.float32),
        "attn_simplex": _xavier_normal(keys[2], (DIM * HEADS, 1), relu_gain),
        "attn_complex": _xavier_normal(keys[3], (DIM * HEADS, 1), relu_gain),
    }

    features = 0.1 * jax.random.normal(keys[4], (N, FEAT_DIM), dtype=jnp.float32)
    graph = _make_adj(keys[5], N)
    graph_homos = jnp.stack([_make_adj(keys[6 + g], N) for g in range(G)], axis=0)

    out = shan_forward(params, features, graph, graph_homos)
    out = jax.block_until_ready(out)
    assert out.shape == (N, N_CLASSES)
    assert bool(jnp.all(jnp.isfinite(out)))
    print("KERNEL_OK")
</pallas_src>

<mosaic_0001>
module attributes {stable_mosaic.version = 11 : i64} {
  func.func @shan_fused_kernel(%arg0: i32, %arg1: memref<1xf32, #tpu.memory_space<smem>>, %arg2: memref<8x16xf32, #tpu.memory_space<vmem>>, %arg3: memref<16x32xf32, #tpu.memory_space<vmem>>, %arg4: memref<1x32xf32, #tpu.memory_space<vmem>>, %arg5: memref<32x8xbf16, #tpu.memory_space<vmem>>, %arg6: memref<1x32xf32, #tpu.memory_space<vmem>>, %arg7: memref<1x32xf32, #tpu.memory_space<vmem>>, %arg8: memref<32x128xf32, #tpu.memory_space<vmem>>, %arg9: memref<1x128xf32, #tpu.memory_space<vmem>>, %arg10: memref<8x128xf32, #tpu.memory_space<vmem>>) attributes {dimension_semantics = [#tpu.dimension_semantics<arbitrary>], iteration_bounds = array<i64: 1>, scalar_prefetch = 0 : i64, scratch_operands = 0 : i64, tpu.core_type = #tpu.core_type<tc>, window_params = [{transform_indices = @transform_0, window_bounds = array<i64: 1>}, {pipeline_mode = #tpu.pipeline_mode<synchronous>, transform_indices = @transform_1, window_bounds = array<i64: 8, 16>}, {pipeline_mode = #tpu.pipeline_mode<synchronous>, transform_indices = @transform_2, window_bounds = array<i64: 16, 32>}, {pipeline_mode = #tpu.pipeline_mode<synchronous>, transform_indices = @transform_3, window_bounds = array<i64: 1, 32>}, {pipeline_mode = #tpu.pipeline_mode<synchronous>, transform_indices = @transform_4, window_bounds = array<i64: 32, 8>}, {pipeline_mode = #tpu.pipeline_mode<synchronous>, transform_indices = @transform_5, window_bounds = array<i64: 1, 32>}, {pipeline_mode = #tpu.pipeline_mode<synchronous>, transform_indices = @transform_6, window_bounds = array<i64: 1, 32>}, {pipeline_mode = #tpu.pipeline_mode<synchronous>, transform_indices = @transform_7, window_bounds = array<i64: 32, 128>}, {pipeline_mode = #tpu.pipeline_mode<synchronous>, transform_indices = @transform_8, window_bounds = array<i64: 1, 128>}, {pipeline_mode = #tpu.pipeline_mode<synchronous>, transform_indices = @transform_9, window_bounds = array<i64: 8, 128>}]} {
    %c0 = arith.constant 0 : index
    %0 = memref.load %arg1[%c0] : memref<1xf32, #tpu.memory_space<smem>>
    %c0_0 = arith.constant 0 : index
    %c0_1 = arith.constant 0 : index
    %1 = vector.load %arg2[%c0_0, %c0_1] : memref<8x16xf32, #tpu.memory_space<vmem>>, vector<8x16xf32>
    %2 = math.sqrt %0 : f32
    %3 = arith.mulf %1, %1 : vector<8x16xf32>
    %cst = arith.constant dense<0.000000e+00> : vector<8xf32>
    %4 = vector.multi_reduction <add>, %3, %cst [1] : vector<8x16xf32> to vector<8xf32>
    %5 = vector.shape_cast %4 : vector<8xf32> to vector<8x1xf32>
    %6 = math.sqrt %5 : vector<8x1xf32>
    %cst_2 = arith.constant 1.000000e-15 : f32
    %7 = vector.broadcast %cst_2 : f32 to vector<8x1xf32>
    %8 = arith.maximumf %6, %7 : vector<8x1xf32>
    %9 = vector.broadcast %2 : f32 to vector<8x1xf32>
    %10 = arith.mulf %9, %8 : vector<8x1xf32>
    %11 = math.tanh %10 : vector<8x1xf32>
    %12 = vector.broadcast %11 : vector<8x1xf32> to vector<8x16xf32>
    %13 = arith.mulf %12, %1 : vector<8x16xf32>
    %14 = vector.broadcast %2 : f32 to vector<8x1xf32>
    %15 = arith.mulf %14, %8 : vector<8x1xf32>
    %16 = tpu.reciprocal %15 {approx = true} : vector<8x1xf32> -> vector<8x1xf32>
    %17 = vector.broadcast %16 : vector<8x1xf32> to vector<8x16xf32>
    %18 = arith.mulf %13, %17 : vector<8x16xf32>
    %19 = arith.mulf %18, %18 : vector<8x16xf32>
    %cst_3 = arith.constant dense<0.000000e+00> : vector<8xf32>
    %20 = vector.multi_reduction <add>, %19, %cst_3 [1] : vector<8x16xf32> to vector<8xf32>
    %21 = vector.shape_cast %20 : vector<8xf32> to vector<8x1xf32>
    %22 = math.sqrt %21 : vector<8x1xf32>
    %cst_4 = arith.constant 1.000000e-15 : f32
    %23 = vector.broadcast %cst_4 : f32 to vector<8x1xf32>
    %24 = arith.maximumf %22, %23 : vector<8x1xf32>
    %25 = math.sqrt %0 : f32
    %cst_5 = arith.constant 0.995999991 : f32
    %26 = arith.divf %cst_5, %25 : f32
    %27 = tpu.reciprocal %24 {approx = true} : vector<8x1xf32> -> vector<8x1xf32>
    %28 = vector.broadcast %26 : f32 to vector<8x1xf32>
    %29 = arith.mulf %28, %27 : vector<8x1xf32>
    %30 = vector.broadcast %29 : vector<8x1xf32> to vector<8x16xf32>
    %31 = arith.mulf %18, %30 : vector<8x16xf32>
    %32 = vector.broadcast %26 : f32 to vector<8x1xf32>
    %33 = arith.cmpf ogt, %24, %32 : vector<8x1xf32>
    %34 = vector.shape_cast %33 : vector<8x1xi1> to vector<8x1xi1>
    %35 = vector.broadcast %34 : vector<8x1xi1> to vector<8x16xi1>
    %36 = arith.select %35, %31, %18 : vector<8x16xi1>, vector<8x16xf32>
    %c0_6 = arith.constant 0 : index
    %c0_7 = arith.constant 0 : index
    %37 = vector.load %arg3[%c0_6, %c0_7] : memref<16x32xf32, #tpu.memory_space<vmem>>, vector<16x32xf32>
    %38 = math.sqrt %0 : f32
    %39 = arith.mulf %36, %36 : vector<8x16xf32>
    %cst_8 = arith.constant dense<0.000000e+00> : vector<8xf32>
    %40 = vector.multi_reduction <add>, %39, %cst_8 [1] : vector<8x16xf32> to vector<8xf32>
    %41 = vector.shape_cast %40 : vector<8xf32> to vector<8x1xf32>
    %42 = math.sqrt %41 : vector<8x1xf32>
    %cst_9 = arith.constant 1.000000e-15 : f32
    %43 = vector.broadcast %cst_9 : f32 to vector<8x1xf32>
    %44 = arith.maximumf %42, %43 : vector<8x1xf32>
    %cst_10 = arith.constant dense<0.000000e+00> : vector<8x32xf32>
    %45 = tpu.matmul %36, %37, %cst_10 {dimension_numbers = #tpu.dot_dimension_numbers<[1], [0], [0], [1], [0, 0, 1, 1], [], []>} : vector<8x16xf32>, vector<16x32xf32>, vector<8x32xf32> -> vector<8x32xf32>
    %46 = arith.mulf %45, %45 : vector<8x32xf32>
    %cst_11 = arith.constant dense<0.000000e+00> : vector<8xf32>
    %47 = vector.multi_reduction <add>, %46, %cst_11 [1] : vector<8x32xf32> to vector<8xf32>
    %48 = vector.shape_cast %47 : vector<8xf32> to vector<8x1xf32>
    %49 = math.sqrt %48 : vector<8x1xf32>
    %cst_12 = arith.constant 1.000000e-15 : f32
    %50 = vector.broadcast %cst_12 : f32 to vector<8x1xf32>
    %51 = arith.maximumf %49, %50 : vector<8x1xf32>
    %52 = tpu.reciprocal %44 {approx = true} : vector<8x1xf32> -> vector<8x1xf32>
    %53 = arith.mulf %51, %52 : vector<8x1xf32>
    %54 = vector.broadcast %38 : f32 to vector<8x1xf32>
    %55 = arith.mulf %54, %44 : vector<8x1xf32>
    %cst_13 = arith.constant -0.99999988 : f32
    %cst_14 = arith.constant 0.99999988 : f32
    %56 = vector.broadcast %cst_13 : f32 to vector<8x1xf32>
    %57 = arith.maximumf %56, %55 : vector<8x1xf32>
    %58 = vector.broadcast %cst_14 : f32 to vector<8x1xf32>
    %59 = arith.minimumf %58, %57 : vector<8x1xf32>
    %cst_15 = arith.constant 1.000000e+00 : f32
    %60 = vector.broadcast %cst_15 : f32 to vector<8x1xf32>
    %61 = arith.addf %60, %59 : vector<8x1xf32>
    %62 = math.log %61 : vector<8x1xf32>
    %cst_16 = arith.constant 1.000000e+00 : f32
    %63 = vector.broadcast %cst_16 : f32 to vector<8x1xf32>
    %64 = arith.subf %63, %59 : vector<8x1xf32>
    %65 = math.log %64 : vector<8x1xf32>
    %66 = arith.subf %62, %65 : vector<8x1xf32>
    %cst_17 = arith.constant 5.000000e-01 : f32
    %67 = vector.broadcast %cst_17 : f32 to vector<8x1xf32>
    %68 = arith.mulf %67, %66 : vector<8x1xf32>
    %69 = arith.mulf %53, %68 : vector<8x1xf32>
    %70 = math.tanh %69 : vector<8x1xf32>
    %71 = vector.broadcast %70 : vector<8x1xf32> to vector<8x32xf32>
    %72 = arith.mulf %71, %45 : vector<8x32xf32>
    %73 = vector.broadcast %38 : f32 to vector<8x1xf32>
    %74 = arith.mulf %51, %73 : vector<8x1xf32>
    %75 = tpu.reciprocal %74 {approx = true} : vector<8x1xf32> -> vector<8x1xf32>
    %76 = vector.broadcast %75 : vector<8x1xf32> to vector<8x32xf32>
    %77 = arith.mulf %72, %76 : vector<8x32xf32>
    %78 = math.absf %45 : vector<8x32xf32>
    %cst_18 = arith.constant dense<0.000000e+00> : vector<8xf32>
    %79 = vector.multi_reduction <add>, %78, %cst_18 [1] : vector<8x32xf32> to vector<8xf32>
    %80 = vector.shape_cast %79 : vector<8xf32> to vector<8x1xf32>
    %cst_19 = arith.constant 0.000000e+00 : f32
    %81 = vector.broadcast %cst_19 : f32 to vector<8x1xf32>
    %82 = arith.cmpf oeq, %80, %81 : vector<8x1xf32>
    %cst_20 = arith.constant 0.000000e+00 : f32
    %83 = vector.broadcast %cst_20 : f32 to vector<8x32xf32>
    %84 = vector.shape_cast %82 : vector<8x1xi1> to vector<8x1xi1>
    %85 = vector.broadcast %84 : vector<8x1xi1> to vector<8x32xi1>
    %86 = arith.select %85, %83, %77 : vector<8x32xi1>, vector<8x32xf32>
    %87 = arith.mulf %86, %86 : vector<8x32xf32>
    %cst_21 = arith.constant dense<0.000000e+00> : vector<8xf32>
    %88 = vector.multi_reduction <add>, %87, %cst_21 [1] : vector<8x32xf32> to vector<8xf32>
    %89 = vector.shape_cast %88 : vector<8xf32> to vector<8x1xf32>
    %90 = math.sqrt %89 : vector<8x1xf32>
    %cst_22 = arith.constant 1.000000e-15 : f32
    %91 = vector.broadcast %cst_22 : f32 to vector<8x1xf32>
    %92 = arith.maximumf %90, %91 : vector<8x1xf32>
    %93 = math.sqrt %0 : f32
    %cst_23 = arith.constant 0.995999991 : f32
    %94 = arith.divf %cst_23, %93 : f32
    %95 = tpu.reciprocal %92 {approx = true} : vector<8x1xf32> -> vector<8x1xf32>
    %96 = vector.broadcast %94 : f32 to vector<8x1xf32>
    %97 = arith.mulf %96, %95 : vector<8x1xf32>
    %98 = vector.broadcast %97 : vector<8x1xf32> to vector<8x32xf32>
    %99 = arith.mulf %86, %98 : vector<8x32xf32>
    %100 = vector.broadcast %94 : f32 to vector<8x1xf32>
    %101 = arith.cmpf ogt, %92, %100 : vector<8x1xf32>
    %102 = vector.shape_cast %101 : vector<8x1xi1> to vector<8x1xi1>
    %103 = vector.broadcast %102 : vector<8x1xi1> to vector<8x32xi1>
    %104 = arith.select %103, %99, %86 : vector<8x32xi1>, vector<8x32xf32>
    %c0_24 = arith.constant 0 : index
    %c0_25 = arith.constant 0 : index
    %105 = vector.load %arg4[%c0_24, %c0_25] : memref<1x32xf32, #tpu.memory_space<vmem>>, vector<1x32xf32>
    %106 = math.sqrt %0 : f32
    %107 = arith.mulf %105, %105 : vector<1x32xf32>
    %cst_26 = arith.constant dense<0.000000e+00> : vector<1xf32>
    %108 = vector.multi_reduction <add>, %107, %cst_26 [1] : vector<1x32xf32> to vector<1xf32>
    %109 = vector.shape_cast %108 : vector<1xf32> to vector<1x1xf32>
    %110 = math.sqrt %109 : vector<1x1xf32>
    %cst_27 = arith.constant 1.000000e-15 : f32
    %111 = vector.broadcast %cst_27 : f32 to vector<1x1xf32>
    %112 = arith.maximumf %110, %111 : vector<1x1xf32>
    %113 = vector.broadcast %106 : f32 to vector<1x1xf32>
    %114 = arith.mulf %113, %112 : vector<1x1xf32>
    %115 = math.tanh %114 : vector<1x1xf32>
    %116 = vector.broadcast %115 : vector<1x1xf32> to vector<1x32xf32>
    %117 = arith.mulf %116, %105 : vector<1x32xf32>
    %118 = vector.broadcast %106 : f32 to vector<1x1xf32>
    %119 = arith.mulf %118, %112 : vector<1x1xf32>
    %120 = tpu.reciprocal %119 {approx = true} : vector<1x1xf32> -> vector<1x1xf32>
    %121 = vector.broadcast %120 : vector<1x1xf32> to vector<1x32xf32>
    %122 = arith.mulf %117, %121 : vector<1x32xf32>
    %123 = arith.mulf %122, %122 : vector<1x32xf32>
    %cst_28 = arith.constant dense<0.000000e+00> : vector<1xf32>
    %124 = vector.multi_reduction <add>, %123, %cst_28 [1] : vector<1x32xf32> to vector<1xf32>
    %125 = vector.shape_cast %124 : vector<1xf32> to vector<1x1xf32>
    %126 = math.sqrt %125 : vector<1x1xf32>
    %cst_29 = arith.constant 1.000000e-15 : f32
    %127 = vector.broadcast %cst_29 : f32 to vector<1x1xf32>
    %128 = arith.maximumf %126, %127 : vector<1x1xf32>
    %129 = math.sqrt %0 : f32
    %cst_30 = arith.constant 0.995999991 : f32
    %130 = arith.divf %cst_30, %129 : f32
    %131 = tpu.reciprocal %128 {approx = true} : vector<1x1xf32> -> vector<1x1xf32>
    %132 = vector.broadcast %130 : f32 to vector<1x1xf32>
    %133 = arith.mulf %132, %131 : vector<1x1xf32>
    %134 = vector.broadcast %133 : vector<1x1xf32> to vector<1x32xf32>
    %135 = arith.mulf %122, %134 : vector<1x32xf32>
    %136 = vector.broadcast %130 : f32 to vector<1x1xf32>
    %137 = arith.cmpf ogt, %128, %136 : vector<1x1xf32>
    %138 = vector.shape_cast %137 : vector<1x1xi1> to vector<1x1xi1>
    %139 = vector.broadcast %138 : vector<1x1xi1> to vector<1x32xi1>
    %140 = arith.select %139, %135, %122 : vector<1x32xi1>, vector<1x32xf32>
    %141 = arith.mulf %104, %104 : vector<8x32xf32>
    %cst_31 = arith.constant dense<0.000000e+00> : vector<8xf32>
    %142 = vector.multi_reduction <add>, %141, %cst_31 [1] : vector<8x32xf32> to vector<8xf32>
    %143 = vector.shape_cast %142 : vector<8xf32> to vector<8x1xf32>
    %144 = arith.mulf %140, %140 : vector<1x32xf32>
    %cst_32 = arith.constant dense<0.000000e+00> : vector<1xf32>
    %145 = vector.multi_reduction <add>, %144, %cst_32 [1] : vector<1x32xf32> to vector<1xf32>
    %146 = vector.shape_cast %145 : vector<1xf32> to vector<1x1xf32>
    %147 = vector.broadcast %140 : vector<1x32xf32> to vector<8x32xf32>
    %148 = arith.mulf %104, %147 : vector<8x32xf32>
    %cst_33 = arith.constant dense<0.000000e+00> : vector<8xf32>
    %149 = vector.multi_reduction <add>, %148, %cst_33 [1] : vector<8x32xf32> to vector<8xf32>
    %150 = vector.shape_cast %149 : vector<8xf32> to vector<8x1xf32>
    %cst_34 = arith.constant 2.000000e+00 : f32
    %151 = arith.mulf %cst_34, %0 : f32
    %152 = vector.broadcast %151 : f32 to vector<8x1xf32>
    %153 = arith.mulf %152, %150 : vector<8x1xf32>
    %cst_35 = arith.constant 1.000000e+00 : f32
    %154 = vector.broadcast %cst_35 : f32 to vector<8x1xf32>
    %155 = arith.addf %154, %153 : vector<8x1xf32>
    %156 = vector.broadcast %0 : f32 to vector<1x1xf32>
    %157 = arith.mulf %156, %146 : vector<1x1xf32>
    %158 = vector.broadcast %157 : vector<1x1xf32> to vector<8x1xf32>
    %159 = arith.addf %155, %158 : vector<8x1xf32>
    %160 = vector.broadcast %159 : vector<8x1xf32> to vector<8x32xf32>
    %161 = arith.mulf %160, %104 : vector<8x32xf32>
    %162 = vector.broadcast %0 : f32 to vector<8x1xf32>
    %163 = arith.mulf %162, %143 : vector<8x1xf32>
    %cst_36 = arith.constant 1.000000e+00 : f32
    %164 = vector.broadcast %cst_36 : f32 to vector<8x1xf32>
    %165 = arith.subf %164, %163 : vector<8x1xf32>
    %166 = vector.broadcast %165 : vector<8x1xf32> to vector<8x32xf32>
    %167 = vector.broadcast %140 : vector<1x32xf32> to vector<8x32xf32>
    %168 = arith.mulf %166, %167 : vector<8x32xf32>
    %169 = arith.addf %161, %168 : vector<8x32xf32>
    %cst_37 = arith.constant 2.000000e+00 : f32
    %170 = arith.mulf %cst_37, %0 : f32
    %171 = vector.broadcast %170 : f32 to vector<8x1xf32>
    %172 = arith.mulf %171, %150 : vector<8x1xf32>
    %cst_38 = arith.constant 1.000000e+00 : f32
    %173 = vector.broadcast %cst_38 : f32 to vector<8x1xf32>
    %174 = arith.addf %173, %172 : vector<8x1xf32>
    %175 = arith.mulf %0, %0 : f32
    %176 = vector.broadcast %175 : f32 to vector<8x1xf32>
    %177 = arith.mulf %176, %143 : vector<8x1xf32>
    %178 = vector.broadcast %146 : vector<1x1xf32> to vector<8x1xf32>
    %179 = arith.mulf %177, %178 : vector<8x1xf32>
    %180 = arith.addf %174, %179 : vector<8x1xf32>
    %cst_39 = arith.constant 1.000000e-15 : f32
    %181 = vector.broadcast %cst_39 : f32 to vector<8x1xf32>
    %182 = arith.maximumf %180, %181 : vector<8x1xf32>
    %183 = tpu.reciprocal %182 {approx = true} : vector<8x1xf32> -> vector<8x1xf32>
    %184 = vector.broadcast %183 : vector<8x1xf32> to vector<8x32xf32>
    %185 = arith.mulf %169, %184 : vector<8x32xf32>
    %186 = arith.mulf %185, %185 : vector<8x32xf32>
    %cst_40 = arith.constant dense<0.000000e+00> : vector<8xf32>
    %187 = vector.multi_reduction <add>, %186, %cst_40 [1] : vector<8x32xf32> to vector<8xf32>
    %188 = vector.shape_cast %187 : vector<8xf32> to vector<8x1xf32>
    %189 = math.sqrt %188 : vector<8x1xf32>
    %cst_41 = arith.constant 1.000000e-15 : f32
    %190 = vector.broadcast %cst_41 : f32 to vector<8x1xf32>
    %191 = arith.maximumf %189, %190 : vector<8x1xf32>
    %192 = math.sqrt %0 : f32
    %cst_42 = arith.constant 0.995999991 : f32
    %193 = arith.divf %cst_42, %192 : f32
    %194 = tpu.reciprocal %191 {approx = true} : vector<8x1xf32> -> vector<8x1xf32>
    %195 = vector.broadcast %193 : f32 to vector<8x1xf32>
    %196 = arith.mulf %195, %194 : vector<8x1xf32>
    %197 = vector.broadcast %196 : vector<8x1xf32> to vector<8x32xf32>
    %198 = arith.mulf %185, %197 : vector<8x32xf32>
    %199 = vector.broadcast %193 : f32 to vector<8x1xf32>
    %200 = arith.cmpf ogt, %191, %199 : vector<8x1xf32>
    %201 = vector.shape_cast %200 : vector<8x1xi1> to vector<8x1xi1>
    %202 = vector.broadcast %201 : vector<8x1xi1> to vector<8x32xi1>
    %203 = arith.select %202, %198, %185 : vector<8x32xi1>, vector<8x32xf32>
    %204 = math.sqrt %0 : f32
    %205 = arith.mulf %203, %203 : vector<8x32xf32>
    %cst_43 = arith.constant dense<0.000000e+00> : vector<8xf32>
    %206 = vector.multi_reduction <add>, %205, %cst_43 [1] : vector<8x32xf32> to vector<8xf32>
    %207 = vector.shape_cast %206 : vector<8xf32> to vector<8x1xf32>
    %208 = math.sqrt %207 : vector<8x1xf32>
    %cst_44 = arith.constant 1.000000e-15 : f32
    %209 = vector.broadcast %cst_44 : f32 to vector<8x1xf32>
    %210 = arith.maximumf %208, %209 : vector<8x1xf32>
    %211 = vector.broadcast %204 : f32 to vector<8x1xf32>
    %212 = arith.mulf %211, %210 : vector<8x1xf32>
    %cst_45 = arith.constant -0.99999988 : f32
    %cst_46 = arith.constant 0.99999988 : f32
    %213 = vector.broadcast %cst_45 : f32 to vector<8x1xf32>
    %214 = arith.maximumf %213, %212 : vector<8x1xf32>
    %215 = vector.broadcast %cst_46 : f32 to vector<8x1xf32>
    %216 = arith.minimumf %215, %214 : vector<8x1xf32>
    %cst_47 = arith.constant 1.000000e+00 : f32
    %217 = vector.broadcast %cst_47 : f32 to vector<8x1xf32>
    %218 = arith.addf %217, %216 : vector<8x1xf32>
    %219 = math.log %218 : vector<8x1xf32>
    %cst_48 = arith.constant 1.000000e+00 : f32
    %220 = vector.broadcast %cst_48 : f32 to vector<8x1xf32>
    %221 = arith.subf %220, %216 : vector<8x1xf32>
    %222 = math.log %221 : vector<8x1xf32>
    %223 = arith.subf %219, %222 : vector<8x1xf32>
    %cst_49 = arith.constant 5.000000e-01 : f32
    %224 = vector.broadcast %cst_49 : f32 to vector<8x1xf32>
    %225 = arith.mulf %224, %223 : vector<8x1xf32>
    %226 = vector.broadcast %204 : f32 to vector<8x1xf32>
    %227 = arith.mulf %226, %210 : vector<8x1xf32>
    %228 = tpu.reciprocal %227 {approx = true} : vector<8x1xf32> -> vector<8x1xf32>
    %229 = arith.mulf %225, %228 : vector<8x1xf32>
    %230 = vector.broadcast %229 : vector<8x1xf32> to vector<8x32xf32>
    %231 = arith.mulf %230, %203 : vector<8x32xf32>
    %c0_50 = arith.constant 0 : index
    %c0_51 = arith.constant 0 : index
    %232 = vector.load %arg5[%c0_50, %c0_51] : memref<32x8xbf16, #tpu.memory_space<vmem>>, vector<32x8xbf16>
    %233 = arith.truncf %231 : vector<8x32xf32> to vector<8x32xbf16>
    %cst_52 = arith.constant dense<0.000000e+00> : vector<32x32xf32>
    %234 = tpu.matmul %232, %233, %cst_52 {dimension_numbers = #tpu.dot_dimension_numbers<[1], [0], [0], [1], [0, 0, 1, 1], [], []>} : vector<32x8xbf16>, vector<8x32xbf16>, vector<32x32xf32> -> vector<32x32xf32>
    %235 = arith.mulf %234, %234 : vector<32x32xf32>
    %cst_53 = arith.constant dense<0.000000e+00> : vector<32xf32>
    %236 = vector.multi_reduction <add>, %235, %cst_53 [1] : vector<32x32xf32> to vector<32xf32>
    %237 = vector.shape_cast %236 : vector<32xf32> to vector<32x1xf32>
    %238 = math.sqrt %237 : vector<32x1xf32>
    %cst_54 = arith.constant 1.000000e-15 : f32
    %239 = vector.broadcast %cst_54 : f32 to vector<32x1xf32>
    %240 = arith.maximumf %238, %239 : vector<32x1xf32>
    %241 = math.sqrt %0 : f32
    %cst_55 = arith.constant 3.10630298 : f32
    %242 = arith.divf %cst_55, %241 : f32
    %243 = tpu.reciprocal %240 {approx = true} : vector<32x1xf32> -> vector<32x1xf32>
    %244 = vector.broadcast %242 : f32 to vector<32x1xf32>
    %245 = arith.mulf %244, %243 : vector<32x1xf32>
    %246 = vector.broadcast %245 : vector<32x1xf32> to vector<32x32xf32>
    %247 = arith.mulf %234, %246 : vector<32x32xf32>
    %248 = vector.broadcast %242 : f32 to vector<32x1xf32>
    %249 = arith.cmpf ogt, %240, %248 : vector<32x1xf32>
    %250 = vector.shape_cast %249 : vector<32x1xi1> to vector<32x1xi1>
    %251 = vector.broadcast %250 : vector<32x1xi1> to vector<32x32xi1>
    %252 = arith.select %251, %247, %234 : vector<32x32xi1>, vector<32x32xf32>
    %cst_56 = arith.constant 0.000000e+00 : f32
    %253 = vector.broadcast %cst_56 : f32 to vector<32x32xf32>
    %254 = arith.maximumf %252, %253 : vector<32x32xf32>
    %255 = vector.extract_strided_slice %254 {offsets = [0, 0], sizes = [8, 32], strides = [1, 1]} : vector<32x32xf32> to vector<8x32xf32>
    %c0_57 = arith.constant 0 : index
    %c0_58 = arith.constant 0 : index
    %256 = vector.load %arg6[%c0_57, %c0_58] : memref<1x32xf32, #tpu.memory_space<vmem>>, vector<1x32xf32>
    %257 = vector.extract_strided_slice %254 {offsets = [8, 0], sizes = [8, 32], strides = [1, 1]} : vector<32x32xf32> to vector<8x32xf32>
    %cst_59 = arith.constant dense<0xFF800000> : vector<32xf32>
    %258 = vector.multi_reduction <maximumf>, %257, %cst_59 [0] : vector<8x32xf32> to vector<32xf32>
    %259 = vector.shape_cast %258 : vector<32xf32> to vector<1x32xf32>
    %260 = arith.mulf %259, %256 : vector<1x32xf32>
    %261 = vector.shape_cast %260 : vector<1x32xf32> to vector<1x1x32xf32>
    %cst_60 = arith.constant dense<0.000000e+00> : vector<1xf32>
    %262 = vector.multi_reduction <add>, %261, %cst_60 [1, 2] : vector<1x1x32xf32> to vector<1xf32>
    %263 = vector.shape_cast %262 : vector<1xf32> to vector<1x1x1xf32>
    %264 = vector.extract %263[0, 0, 0] : f32 from vector<1x1x1xf32>
    %265 = vector.extract_strided_slice %254 {offsets = [16, 0], sizes = [8, 32], strides = [1, 1]} : vector<32x32xf32> to vector<8x32xf32>
    %cst_61 = arith.constant dense<0xFF800000> : vector<32xf32>
    %266 = vector.multi_reduction <maximumf>, %265, %cst_61 [0] : vector<8x32xf32> to vector<32xf32>
    %267 = vector.shape_cast %266 : vector<32xf32> to vector<1x32xf32>
    %268 = arith.mulf %267, %256 : vector<1x32xf32>
    %269 = vector.shape_cast %268 : vector<1x32xf32> to vector<1x1x32xf32>
    %cst_62 = arith.constant dense<0.000000e+00> : vector<1xf32>
    %270 = vector.multi_reduction <add>, %269, %cst_62 [1, 2] : vector<1x1x32xf32> to vector<1xf32>
    %271 = vector.shape_cast %270 : vector<1xf32> to vector<1x1x1xf32>
    %272 = vector.extract %271[0, 0, 0] : f32 from vector<1x1x1xf32>
    %273 = vector.extract_strided_slice %254 {offsets = [24, 0], sizes = [8, 32], strides = [1, 1]} : vector<32x32xf32> to vector<8x32xf32>
    %cst_63 = arith.constant dense<0xFF800000> : vector<32xf32>
    %274 = vector.multi_reduction <maximumf>, %273, %cst_63 [0] : vector<8x32xf32> to vector<32xf32>
    %275 = vector.shape_cast %274 : vector<32xf32> to vector<1x32xf32>
    %276 = arith.mulf %275, %256 : vector<1x32xf32>
    %277 = vector.shape_cast %276 : vector<1x32xf32> to vector<1x1x32xf32>
    %cst_64 = arith.constant dense<0.000000e+00> : vector<1xf32>
    %278 = vector.multi_reduction <add>, %277, %cst_64 [1, 2] : vector<1x1x32xf32> to vector<1xf32>
    %279 = vector.shape_cast %278 : vector<1xf32> to vector<1x1x1xf32>
    %280 = vector.extract %279[0, 0, 0] : f32 from vector<1x1x1xf32>
    %281 = arith.maximumf %264, %272 : f32
    %282 = arith.maximumf %281, %280 : f32
    %283 = arith.subf %264, %282 : f32
    %284 = math.exp %283 : f32
    %285 = arith.subf %272, %282 : f32
    %286 = math.exp %285 : f32
    %287 = arith.subf %280, %282 : f32
    %288 = math.exp %287 : f32
    %289 = arith.addf %284, %286 : f32
    %290 = arith.addf %289, %288 : f32
    %cst_65 = arith.constant 0.000000e+00 : f32
    %291 = vector.broadcast %cst_65 : f32 to vector<8x32xf32>
    %292 = vector.extract_strided_slice %254 {offsets = [8, 0], sizes = [8, 32], strides = [1, 1]} : vector<32x32xf32> to vector<8x32xf32>
    %293 = arith.divf %284, %290 : f32
    %294 = vector.broadcast %293 : f32 to vector<8x32xf32>
    %295 = arith.mulf %292, %294 : vector<8x32xf32>
    %296 = arith.addf %291, %295 : vector<8x32xf32>
    %297 = vector.extract_strided_slice %254 {offsets = [16, 0], sizes = [8, 32], strides = [1, 1]} : vector<32x32xf32> to vector<8x32xf32>
    %298 = arith.divf %286, %290 : f32
    %299 = vector.broadcast %298 : f32 to vector<8x32xf32>
    %300 = arith.mulf %297, %299 : vector<8x32xf32>
    %301 = arith.addf %296, %300 : vector<8x32xf32>
    %302 = vector.extract_strided_slice %254 {offsets = [24, 0], sizes = [8, 32], strides = [1, 1]} : vector<32x32xf32> to vector<8x32xf32>
    %303 = arith.divf %288, %290 : f32
    %304 = vector.broadcast %303 : f32 to vector<8x32xf32>
    %305 = arith.mulf %302, %304 : vector<8x32xf32>
    %306 = arith.addf %301, %305 : vector<8x32xf32>
    %307 = arith.mulf %306, %306 : vector<8x32xf32>
    %cst_66 = arith.constant dense<0.000000e+00> : vector<8xf32>
    %308 = vector.multi_reduction <add>, %307, %cst_66 [1] : vector<8x32xf32> to vector<8xf32>
    %309 = vector.shape_cast %308 : vector<8xf32> to vector<8x1xf32>
    %310 = math.sqrt %309 : vector<8x1xf32>
    %cst_67 = arith.constant 1.000000e-15 : f32
    %311 = vector.broadcast %cst_67 : f32 to vector<8x1xf32>
    %312 = arith.maximumf %310, %311 : vector<8x1xf32>
    %313 = math.sqrt %0 : f32
    %cst_68 = arith.constant 3.10630298 : f32
    %314 = arith.divf %cst_68, %313 : f32
    %315 = tpu.reciprocal %312 {approx = true} : vector<8x1xf32> -> vector<8x1xf32>
    %316 = vector.broadcast %314 : f32 to vector<8x1xf32>
    %317 = arith.mulf %316, %315 : vector<8x1xf32>
    %318 = vector.broadcast %317 : vector<8x1xf32> to vector<8x32xf32>
    %319 = arith.mulf %306, %318 : vector<8x32xf32>
    %320 = vector.broadcast %314 : f32 to vector<8x1xf32>
    %321 = arith.cmpf ogt, %312, %320 : vector<8x1xf32>
    %322 = vector.shape_cast %321 : vector<8x1xi1> to vector<8x1xi1>
    %323 = vector.broadcast %322 : vector<8x1xi1> to vector<8x32xi1>
    %324 = arith.select %323, %319, %306 : vector<8x32xi1>, vector<8x32xf32>
    %c0_69 = arith.constant 0 : index
    %c0_70 = arith.constant 0 : index
    %325 = vector.load %arg7[%c0_69, %c0_70] : memref<1x32xf32, #tpu.memory_space<vmem>>, vector<1x32xf32>
    %cst_71 = arith.constant dense<0xFF800000> : vector<32xf32>
    %326 = vector.multi_reduction <maximumf>, %255, %cst_71 [0] : vector<8x32xf32> to vector<32xf32>
    %327 = vector.shape_cast %326 : vector<32xf32> to vector<1x32xf32>
    %328 = arith.mulf %327, %325 : vector<1x32xf32>
    %329 = vector.shape_cast %328 : vector<1x32xf32> to vector<1x1x32xf32>
    %cst_72 = arith.constant dense<0.000000e+00> : vector<1xf32>
    %330 = vector.multi_reduction <add>, %329, %cst_72 [1, 2] : vector<1x1x32xf32> to vector<1xf32>
    %331 = vector.shape_cast %330 : vector<1xf32> to vector<1x1x1xf32>
    %332 = vector.extract %331[0, 0, 0] : f32 from vector<1x1x1xf32>
    %cst_73 = arith.constant dense<0xFF800000> : vector<32xf32>
    %333 = vector.multi_reduction <maximumf>, %324, %cst_73 [0] : vector<8x32xf32> to vector<32xf32>
    %334 = vector.shape_cast %333 : vector<32xf32> to vector<1x32xf32>
    %335 = arith.mulf %334, %325 : vector<1x32xf32>
    %336 = vector.shape_cast %335 : vector<1x32xf32> to vector<1x1x32xf32>
    %cst_74 = arith.constant dense<0.000000e+00> : vector<1xf32>
    %337 = vector.multi_reduction <add>, %336, %cst_74 [1, 2] : vector<1x1x32xf32> to vector<1xf32>
    %338 = vector.shape_cast %337 : vector<1xf32> to vector<1x1x1xf32>
    %339 = vector.extract %338[0, 0, 0] : f32 from vector<1x1x1xf32>
    %340 = arith.maximumf %332, %339 : f32
    %341 = arith.subf %332, %340 : f32
    %342 = math.exp %341 : f32
    %343 = arith.subf %339, %340 : f32
    %344 = math.exp %343 : f32
    %345 = arith.addf %342, %344 : f32
    %346 = arith.divf %342, %345 : f32
    %347 = vector.broadcast %346 : f32 to vector<8x32xf32>
    %348 = arith.mulf %255, %347 : vector<8x32xf32>
    %349 = arith.divf %344, %345 : f32
    %350 = vector.broadcast %349 : f32 to vector<8x32xf32>
    %351 = arith.mulf %324, %350 : vector<8x32xf32>
    %352 = arith.addf %348, %351 : vector<8x32xf32>
    %353 = arith.mulf %352, %352 : vector<8x32xf32>
    %cst_75 = arith.constant dense<0.000000e+00> : vector<8xf32>
    %354 = vector.multi_reduction <add>, %353, %cst_75 [1] : vector<8x32xf32> to vector<8xf32>
    %355 = vector.shape_cast %354 : vector<8xf32> to vector<8x1xf32>
    %356 = math.sqrt %355 : vector<8x1xf32>
    %cst_76 = arith.constant 1.000000e-15 : f32
    %357 = vector.broadcast %cst_76 : f32 to vector<8x1xf32>
    %358 = arith.maximumf %356, %357 : vector<8x1xf32>
    %359 = math.sqrt %0 : f32
    %cst_77 = arith.constant 3.10630298 : f32
    %360 = arith.divf %cst_77, %359 : f32
    %361 = tpu.reciprocal %358 {approx = true} : vector<8x1xf32> -> vector<8x1xf32>
    %362 = vector.broadcast %360 : f32 to vector<8x1xf32>
    %363 = arith.mulf %362, %361 : vector<8x1xf32>
    %364 = vector.broadcast %363 : vector<8x1xf32> to vector<8x32xf32>
    %365 = arith.mulf %352, %364 : vector<8x32xf32>
    %366 = vector.broadcast %360 : f32 to vector<8x1xf32>
    %367 = arith.cmpf ogt, %358, %366 : vector<8x1xf32>
    %368 = vector.shape_cast %367 : vector<8x1xi1> to vector<8x1xi1>
    %369 = vector.broadcast %368 : vector<8x1xi1> to vector<8x32xi1>
    %370 = arith.select %369, %365, %352 : vector<8x32xi1>, vector<8x32xf32>
    %c0_78 = arith.constant 0 : index
    %c0_79 = arith.constant 0 : index
    %371 = vector.load %arg8[%c0_78, %c0_79] : memref<32x128xf32, #tpu.memory_space<vmem>>, vector<32x128xf32>
    %cst_80 = arith.constant dense<0.000000e+00> : vector<8x128xf32>
    %372 = tpu.matmul %370, %371, %cst_80 {dimension_numbers = #tpu.dot_dimension_numbers<[1], [0], [0], [1], [0, 0, 1, 1], [], []>} : vector<8x32xf32>, vector<32x128xf32>, vector<8x128xf32> -> vector<8x128xf32>
    %c0_81 = arith.constant 0 : index
    %c0_82 = arith.constant 0 : index
    %373 = vector.load %arg9[%c0_81, %c0_82] : memref<1x128xf32, #tpu.memory_space<vmem>>, vector<1x128xf32>
    %374 = vector.broadcast %373 : vector<1x128xf32> to vector<8x128xf32>
    %375 = arith.addf %372, %374 : vector<8x128xf32>
    %c0_83 = arith.constant 0 : index
    %c0_84 = arith.constant 0 : index
    %376 = vector.load %arg10[%c0_83, %c0_84] : memref<8x128xf32, #tpu.memory_space<vmem>>, vector<8x128xf32>
    tpu.vector_store %arg10[%c0_83, %c0_84], %375 {strides = array<i32>} : memref<8x128xf32, #tpu.memory_space<vmem>>, vector<8x128xf32>,
    return
  }
  func.func @transform_0(%arg0: i32) -> i32 {
    %c0_i32 = arith.constant 0 : i32
    %c0_i32_0 = arith.constant 0 : i32
    return %c0_i32 : i32
  }
  func.func @transform_1(%arg0: i32) -> (i32, i32) {
    %c0_i32 = arith.constant 0 : i32
    %c0_i32_0 = arith.constant 0 : i32
    %c0_i32_1 = arith.constant 0 : i32
    return %c0_i32, %c0_i32_0 : i32, i32
  }
  func.func @transform_2(%arg0: i32) -> (i32, i32) {
    %c0_i32 = arith.constant 0 : i32
    %c0_i32_0 = arith.constant 0 : i32
    %c0_i32_1 = arith.constant 0 : i32
    return %c0_i32, %c0_i32_0 : i32, i32
  }
  func.func @transform_3(%arg0: i32) -> (i32, i32) {
    %c0_i32 = arith.constant 0 : i32
    %c0_i32_0 = arith.constant 0 : i32
    %c0_i32_1 = arith.constant 0 : i32
    return %c0_i32, %c0_i32_0 : i32, i32
  }
  func.func @transform_4(%arg0: i32) -> (i32, i32) {
    %c0_i32 = arith.constant 0 : i32
    %c0_i32_0 = arith.constant 0 : i32
    %c0_i32_1 = arith.constant 0 : i32
    return %c0_i32, %c0_i32_0 : i32, i32
  }
  func.func @transform_5(%arg0: i32) -> (i32, i32) {
    %c0_i32 = arith.constant 0 : i32
    %c0_i32_0 = arith.constant 0 : i32
    %c0_i32_1 = arith.constant 0 : i32
    return %c0_i32, %c0_i32_0 : i32, i32
  }
  func.func @transform_6(%arg0: i32) -> (i32, i32) {
    %c0_i32 = arith.constant 0 : i32
    %c0_i32_0 = arith.constant 0 : i32
    %c0_i32_1 = arith.constant 0 : i32
    return %c0_i32, %c0_i32_0 : i32, i32
  }
  func.func @transform_7(%arg0: i32) -> (i32, i32) {
    %c0_i32 = arith.constant 0 : i32
    %c0_i32_0 = arith.constant 0 : i32
    %c0_i32_1 = arith.constant 0 : i32
    return %c0_i32, %c0_i32_0 : i32, i32
  }
  func.func @transform_8(%arg0: i32) -> (i32, i32) {
    %c0_i32 = arith.constant 0 : i32
    %c0_i32_0 = arith.constant 0 : i32
    %c0_i32_1 = arith.constant 0 : i32
    return %c0_i32, %c0_i32_0 : i32, i32
  }
  func.func @transform_9(%arg0: i32) -> (i32, i32) {
    %c0_i32 = arith.constant 0 : i32
    %c0_i32_0 = arith.constant 0 : i32
    %c0_i32_1 = arith.constant 0 : i32
    return %c0_i32, %c0_i32_0 : i32, i32
  }
}

</mosaic_0001>

<llo_original>
// kernel: tpu_custom_call.1
$region0: #{tpu_custom_call.1}
  #allocation0 [shape = 'u32[]', space=smem, size = 0x4, offset = 0x4, fixed_abs, tag = 'smem constant byte address 0x4 - core index']
  #allocation1 [shape = 'u32[72,128]{1,0:T(1,128)}', space=vmem, size = 0x9000, scoped, tag = 'internal scratch']
  #allocation2 [shape = 'f32[1]{0:T(128)S(6)}', space=smem, size = 0x200, scoped, tag = 'scoped memory for tpu_custom_call.1']
  %s0 = inlined_call_operand.<no memory space> [shape: f32[1], index: 0, kind: input, shape index: {}]
  %s1 = inlined_call_operand.hbm [shape: f32[8,16], index: 1, kind: input, shape index: {}]
  %s2 = inlined_call_operand.vmem [shape: f32[16,32], index: 2, kind: input, shape index: {}]
  %s3 = inlined_call_operand.vmem [shape: f32[1,32], index: 3, kind: input, shape index: {}]
  %s4 = inlined_call_operand.vmem [shape: bf16[32,8], index: 4, kind: input, shape index: {}]
  %s5 = inlined_call_operand.vmem [shape: f32[1,32], index: 5, kind: input, shape index: {}]
  %s6 = inlined_call_operand.vmem [shape: f32[1,32], index: 6, kind: input, shape index: {}]
  %s7 = inlined_call_operand.hbm [shape: f32[32,128], index: 7, kind: input, shape index: {}]
  %s8 = inlined_call_operand.vmem [shape: f32[1,128], index: 8, kind: input, shape index: {}]
  %s9 = inlined_call_operand.hbm [shape: f32[8,128], index: 9, kind: output, shape index: {}]
  %s10 = sld [smem:[#allocation0]]
  $region54: #{tpu_custom_call.1} parent=0
    _
  %s12 = ssub.s32 1, %s10
  %s13 = scalar_select 0, %s12, %s10
  %14 = sst [smem:[#allocation2]] %s0
  $region1: #{tpu_custom_call.1} parent=0
    #allocation3 [shape = 'u8[4096]{0}', space=vmem, size = 0x1000, scoped, tag = 'input window, operand 1, single buffered']
    #allocation4 [shape = 's32[1]{0}', space=sflag, size = 0x4, scoped, tag = 'scoped memory for tpu_custom_call.1']
    #allocation5 [shape = 's32[1]{0}', space=sflag, size = 0x4, scoped, tag = 'scoped memory for tpu_custom_call.1']
    #allocation6 [shape = 'u8[16384]{0}', space=vmem, size = 0x4000, scoped, tag = 'input window, operand 7, single buffered']
    #allocation7 [shape = 's32[1]{0}', space=sflag, size = 0x4, scoped, tag = 'scoped memory for tpu_custom_call.1']
    #allocation8 [shape = 'u8[4096]{0}', space=vmem, size = 0x1000, scoped, tag = 'output window, operand 0, single buffered']
    %15 = vsyncpa [#allocation4], 0
    %16 = vsyncpa [#allocation7], 0
    %17 = vsyncpa [#allocation5], 0
    // Predicated region
    $region2: #{tpu_custom_call.1} parent=1 // pred_check
      _
    $region3: #{tpu_custom_call.1} parent=1 // pred_check_branch
      %19 = sbr.rel (0) target = $region5
    $region4: #{tpu_custom_call.1} parent=1 // pred_region
      _
    $region5: #{tpu_custom_call.1} parent=1 // pred_fallthru
      _
    // Predicated region
    $region6: #{tpu_custom_call.1} parent=1 // pred_check
      _
    $region7: #{tpu_custom_call.1} parent=1 // pred_check_branch
      %21 = sbr.rel (0) target = $region9
    $region8: #{tpu_custom_call.1} parent=1 // pred_region
      %23 = vsyncadd [#allocation4], 0
      %s25 = sshll.u32 %s1, 4
      %s26 = int_to_ptr.hbm [resolvable:$true] %s25
      %s27 = sshll.u32 [#allocation3], 4
      %s28 = int_to_ptr.vmem [resolvable:$true] %s27
      %30 = dma.hbm_to_vmem [thread:$0]  %s26, 128, %s28, [#allocation4]
    $region9: #{tpu_custom_call.1} parent=1 // pred_fallthru
      _
    // Predicated region
    $region10: #{tpu_custom_call.1} parent=1 // pred_check
      _
    $region11: #{tpu_custom_call.1} parent=1 // pred_check_branch
      %32 = sbr.rel (0) target = $region13
    $region12: #{tpu_custom_call.1} parent=1 // pred_region
      _
    $region13: #{tpu_custom_call.1} parent=1 // pred_fallthru
      _
    // Predicated region
    $region14: #{tpu_custom_call.1} parent=1 // pred_check
      _
    $region15: #{tpu_custom_call.1} parent=1 // pred_check_branch
      %34 = sbr.rel (0) target = $region17
    $region16: #{tpu_custom_call.1} parent=1 // pred_region
      _
    $region17: #{tpu_custom_call.1} parent=1 // pred_fallthru
      _
    // Predicated region
    $region18: #{tpu_custom_call.1} parent=1 // pred_check
      _
    $region19: #{tpu_custom_call.1} parent=1 // pred_check_branch
      %36 = sbr.rel (0) target = $region21
    $region20: #{tpu_custom_call.1} parent=1 // pred_region
      _
    $region21: #{tpu_custom_call.1} parent=1 // pred_fallthru
      _
    // Predicated region
    $region22: #{tpu_custom_call.1} parent=1 // pred_check
      _
    $region23: #{tpu_custom_call.1} parent=1 // pred_check_branch
      %38 = sbr.rel (0) target = $region25
    $region24: #{tpu_custom_call.1} parent=1 // pred_region
      _
    $region25: #{tpu_custom_call.1} parent=1 // pred_fallthru
      _
    // Predicated region
    $region26: #{tpu_custom_call.1} parent=1 // pred_check
      _
    $region27: #{tpu_custom_call.1} parent=1 // pred_check_branch
      %40 = sbr.rel (0) target = $region29
    $region28: #{tpu_custom_call.1} parent=1 // pred_region
      _
    $region29: #{tpu_custom_call.1} parent=1 // pred_fallthru
      _
    // Predicated region
    $region30: #{tpu_custom_call.1} parent=1 // pred_check
      _
    $region31: #{tpu_custom_call.1} parent=1 // pred_check_branch
      %42 = sbr.rel (0) target = $region33
    $region32: #{tpu_custom_call.1} parent=1 // pred_region
      %44 = vsyncadd [#allocation7], 0
      %s45 = sshll.u32 %s7, 4
      %s46 = int_to_ptr.hbm [resolvable:$true] %s45
      %s47 = sshll.u32 [#allocation6], 4
      %s48 = int_to_ptr.vmem [resolvable:$true] %s47
      %53 = dma.hbm_to_vmem [thread:$0]  %s46, 512, %s48, [#allocation7], 128, 128, 8
    $region33: #{tpu_custom_call.1} parent=1 // pred_fallthru
      _
    // Predicated region
    $region34: #{tpu_custom_call.1} parent=1 // pred_check
      _
    $region35: #{tpu_custom_call.1} parent=1 // pred_check_branch
      %55 = sbr.rel (0) target = $region37
    $region36: #{tpu_custom_call.1} parent=1 // pred_region
      _
    $region37: #{tpu_custom_call.1} parent=1 // pred_fallthru
      _
    // Predicated region
    $region38: #{tpu_custom_call.1} parent=1 // pred_check
      _
    $region39: #{tpu_custom_call.1} parent=1 // pred_check_branch
      %57 = sbr.rel (0) target = $region41
    $region40: #{tpu_custom_call.1} parent=1 // pred_region
      %59 = dma.done [#allocation4], 128
    $region41: #{tpu_custom_call.1} parent=1 // pred_fallthru
      _
    // Predicated region
    $region42: #{tpu_custom_call.1} parent=1 // pred_check
      _
    $region43: #{tpu_custom_call.1} parent=1 // pred_check_branch
      %61 = sbr.rel (0) target = $region45
    $region44: #{tpu_custom_call.1} parent=1 // pred_region
      %63 = dma.done [#allocation7], 512
    $region45: #{tpu_custom_call.1} parent=1 // pred_fallthru
      _
    %s65 = sld [smem:[#allocation2]]
    %v66 = vld [vmem:[#allocation3] sm:$0xff]
    %v67 = vstv %s65
    %v68 = vrsqrt.pop %v67
    %v69 = vmul.f32 %v68, %v67
    %v70 = vmul.f32 %v69, %v68
    %v71 = vmul.f32 0.5, %v70
    %v72 = vsub.f32 1.5, %v71
    %v73 = vmul.f32 %v68, %v72
    %v74 = vmul.f32 %v67, %v73
    %vm75 = vcmp.eq.f32.partialorder %v67, inf
    %v76 = vsel %vm75, %v67, %v74
    %vm77 = vcmp.eq.f32.partialorder %v67, 0.0
    %v78 = vand.u32 %v67, 2147483648
    %v79 = vsel %vm77, %v78, %v76
    %s80 = vtos %v79
    %v81 = vmul.f32 %v66, %v66
    %vm82 = vcmask 130048
    %v83 = vsel %vm82, %v81, 0.0
    %84 = vadd.xlane.f32.xlu0 %v83
    %v85 = vpop.xlane.xlu0 %84
    %v86 = vrsqrt.pop %v85
    %v87 = vmul.f32 %v86, %v85
    %v88 = vmul.f32 %v87, %v86
    %v89 = vmul.f32 0.5, %v88
    %v90 = vsub.f32 1.5, %v89
    %v91 = vmul.f32 %v86, %v90
    %v92 = vmul.f32 %v85, %v91
    %vm93 = vcmp.eq.f32.partialorder %v85, inf
    %v94 = vsel %vm93, %v85, %v92
    %vm95 = vcmp.eq.f32.partialorder %v85, 0.0
    %v96 = vand.u32 %v85, 2147483648
    %v97 = vsel %vm95, %v96, %v94
    %v98 = vmax.f32 %v97, 1e-15
    %v99 = vstv %s80
    %v100 = vmul.f32 %v99, %v98
    %v101 = vtanh.pop %v100
    %v102 = vmul.f32 %v101, %v66
    %v103 = vrcp.pop %v100
    %v104 = vmul.f32 %v102, %v103
    %v105 = vmul.f32 %v104, %v104
    %v106 = vsel %vm82, %v105, 0.0
    %107 = vadd.xlane.f32.xlu0 %v106
    %v108 = vpop.xlane.xlu0 %107
    %v109 = vrsqrt.pop %v108
    %v110 = vmul.f32 %v109, %v108
    %v111 = vmul.f32 %v110, %v109
    %v112 = vmul.f32 0.5, %v111
    %v113 = vsub.f32 1.5, %v112
    %v114 = vmul.f32 %v109, %v113
    %v115 = vmul.f32 %v108, %v114
    %vm116 = vcmp.eq.f32.partialorder %v108, inf
    %v117 = vsel %vm116, %v108, %v115
    %vm118 = vcmp.eq.f32.partialorder %v108, 0.0
    %v119 = vand.u32 %v108, 2147483648
    %v120 = vsel %vm118, %v119, %v117
    %v121 = vmax.f32 %v120, 1e-15
    %v122 = vstv %s80
    %v123 = vrcp.pop %v122
    %v124 = vmul.f32 %v122, %v123
    %v125 = vsub.f32 1.0, %v124
    %v126 = vmul.f32 %v123, %v125
    %v127 = vadd.f32 %v123, %v126
    %vm128 = vweird.f32 %v122
    %vm129 = vweird.f32 %v123
    %vm130 = vmor %vm128, %vm129
    %v131 = vsel %vm130, %v123, %v127
    %v132 = vand.u32 2147483647, %v122
    %vm133 = vcmp.eq.f32.partialorder %v132, 8.507059e+37
    %v134 = vand.u32 %v122, 2147483648
    %v135 = vor.u32 1.1754944e-38, %v134
    %v136 = vsel %vm133, %v135, %v131
    %s137 = vtos %v136
    %s138 = smul.f32 0.996, %s137
    %v139 = vrcp.pop %v121
    %v140 = vstv %s138
    %v141 = vmul.f32 %v140, %v139
    %v142 = vmul.f32 %v104, %v141
    %vm143 = vcmp.gt.f32.partialorder %v121, %v140
    %v144 = vsel %vm143, 1, 0
    %vm145 = vcmp.eq.s32.totalorder %v144, 1
    %v146 = vsel %vm145, %v142, %v104
    %v147 = vld [vmem:[%s2] sm:$0xff]
    %v148 = vld [vmem:[%s2 + $0x8] sm:$0xff]
    %v149 = vmul.f32 %v146, %v146
    %v150 = vsel %vm82, %v149, 0.0
    %151 = vadd.xlane.f32.xlu0 %v150
    %v152 = vpop.xlane.xlu0 %151
    %v153 = vrsqrt.pop %v152
    %v154 = vmul.f32 %v153, %v152
    %v155 = vmul.f32 %v154, %v153
    %v156 = vmul.f32 0.5, %v155
    %v157 = vsub.f32 1.5, %v156
    %v158 = vmul.f32 %v153, %v157
    %v159 = vmul.f32 %v152, %v158
    %vm160 = vcmp.eq.f32.partialorder %v152, inf
    %v161 = vsel %vm160, %v152, %v159
    %vm162 = vcmp.eq.f32.partialorder %v152, 0.0
    %v163 = vand.u32 %v152, 2147483648
    %v164 = vsel %vm162, %v163, %v161
    %v165 = vmax.f32 %v164, 1e-15
    %v167 = vsel %vm82, %v146, 0
    %169 = vmatpush.msra.mxu0 0.0
    %170 = vmatpush.msra.mxu0 0.0
    %171 = vmatpush.msra.mxu0 0.0
    %172 = vmatpush.msra.mxu0 0.0
    %173 = vmatpush.msra.mxu0 0.0
    %174 = vmatpush.msra.mxu0 0.0
    %175 = vmatpush.msra.mxu0 0.0
    %176 = vmatpush.msra.mxu0 0.0
    %177 = vmatpush.msra.mxu0 0.0
    %178 = vmatpush.msra.mxu0 0.0
    %179 = vmatpush.msra.mxu0 0.0
    %180 = vmatpush.msra.mxu0 0.0
    %181 = vmatpush.msra.mxu0 0.0
    %182 = vmatpush.msra.mxu0 0.0
    %183 = vmatpush.msra.mxu0 %v148
    %184 = vmatpush.msra.mxu0 %v147
    %185 = vmatmul.f32.gmra.mxu0 %v167
    %v186 = vpop.f32.mrf.mxu0
    %v187 = vadd.f32 0.0, %v186
    %188 = vdwg.mxu0
    %v189 = vmul.f32 %v187, %v187
    %vm190 = vcmask 261120
    %v191 = vsel %vm190, %v189, 0.0
    %192 = vadd.xlane.f32.xlu0 %v191
    %v193 = vpop.xlane.xlu0 %192
    %v194 = vrsqrt.pop %v193
    %v195 = vmul.f32 %v194, %v193
    %v196 = vmul.f32 %v195, %v194
    %v197 = vmul.f32 0.5, %v196
    %v198 = vsub.f32 1.5, %v197
    %v199 = vmul.f32 %v194, %v198
    %v200 = vmul.f32 %v193, %v199
    %vm201 = vcmp.eq.f32.partialorder %v193, inf
    %v202 = vsel %vm201, %v193, %v200
    %vm203 = vcmp.eq.f32.partialorder %v193, 0.0
    %v204 = vand.u32 %v193, 2147483648
    %v205 = vsel %vm203, %v204, %v202
    %v206 = vmax.f32 %v205, 1e-15
    %v207 = vrcp.pop %v165
    %v208 = vmul.f32 %v206, %v207
    %v209 = vmul.f32 %v99, %v165
    %v210 = vmax.f32 %v209, -0.9999999
    %v211 = vmin.f32 %v210, 0.9999999
    %v212 = vadd.f32 %v211, 1.0
    %v213 = vlog2.pop %v212
    %v214 = vmul.f32 %v213, 0.6931472
    %v215 = vsub.f32 1.0, %v211
    %v216 = vlog2.pop %v215
    %v217 = vmul.f32 %v216, 0.6931472
    %v218 = vsub.f32 %v214, %v217
    %v219 = vmul.f32 %v218, 0.5
    %v220 = vmul.f32 %v208, %v219
    %v221 = vtanh.pop %v220
    %v222 = vmul.f32 %v221, %v187
    %v223 = vmul.f32 %v206, %v99
    %v224 = vrcp.pop %v223
    %v225 = vmul.f32 %v222, %v224
    %v226 = vand.u32 2147483647, %v187
    %v227 = vsel %vm190, %v226, 0.0
    %228 = vadd.xlane.f32.xlu0 %v227
    %v229 = vpop.xlane.xlu0 %228
    %vm230 = vcmp.eq.f32.partialorder %v229, 0.0
    %v231 = vsel %vm230, 1, 0
    %vm232 = vcmp.eq.s32.totalorder %v231, 1
    %v233 = vsel %vm232, 0.0, %v225
    %v234 = vmul.f32 %v233, %v233
    %v235 = vsel %vm190, %v234, 0.0
    %236 = vadd.xlane.f32.xlu0 %v235
    %v237 = vpop.xlane.xlu0 %236
    %v238 = vrsqrt.pop %v237
    %v239 = vmul.f32 %v238, %v237
    %v240 = vmul.f32 %v239, %v238
    %v241 = vmul.f32 0.5, %v240
    %v242 = vsub.f32 1.5, %v241
    %v243 = vmul.f32 %v238, %v242
    %v244 = vmul.f32 %v237, %v243
    %vm245 = vcmp.eq.f32.partialorder %v237, inf
    %v246 = vsel %vm245, %v237, %v244
    %vm247 = vcmp.eq.f32.partialorder %v237, 0.0
    %v248 = vand.u32 %v237, 2147483648
    %v249 = vsel %vm247, %v248, %v246
    %v250 = vmax.f32 %v249, 1e-15
    %v251 = vrcp.pop %v250
    %v252 = vmul.f32 %v140, %v251
    %v253 = vmul.f32 %v233, %v252
    %vm254 = vcmp.gt.f32.partialorder %v250, %v140
    %v255 = vsel %vm254, 1, 0
    %vm256 = vcmp.eq.s32.totalorder %v255, 1
    %v257 = vsel %vm256, %v253, %v233
    %v258 = vld [vmem:[%s3] sm:$0x1]
    %v259 = vmul.f32 %v258, %v258
    %vm260 = vcmask 253952
    %v261 = vsel %vm260, %v259, 0.0
    %262 = vadd.xlane.f32.xlu0 %v261
    %v263 = vpop.xlane.xlu0 %262
    %v264 = vrsqrt.pop %v263
    %v265 = vmul.f32 %v264, %v263
    %v266 = vmul.f32 %v265, %v264
    %v267 = vmul.f32 0.5, %v266
    %v268 = vsub.f32 1.5, %v267
    %v269 = vmul.f32 %v264, %v268
    %v270 = vmul.f32 %v263, %v269
    %vm271 = vcmp.eq.f32.partialorder %v263, inf
    %v272 = vsel %vm271, %v263, %v270
    %vm273 = vcmp.eq.f32.partialorder %v263, 0.0
    %v274 = vand.u32 %v263, 2147483648
    %v275 = vsel %vm273, %v274, %v272
    %v276 = vmax.f32 %v275, 1e-15
    %v277 = vmul.f32 %v99, %v276
    %v278 = vtanh.pop %v277
    %v279 = vmul.f32 %v278, %v258
    %v280 = vrcp.pop %v277
    %v281 = vmul.f32 %v279, %v280
    %v282 = vmul.f32 %v281, %v281
    %v283 = vsel %vm260, %v282, 0.0
    %284 = vadd.xlane.f32.xlu0 %v283
    %v285 = vpop.xlane.xlu0 %284
    %v286 = vrsqrt.pop %v285
    %v287 = vmul.f32 %v286, %v285
    %v288 = vmul.f32 %v287, %v286
    %v289 = vmul.f32 0.5, %v288
    %v290 = vsub.f32 1.5, %v289
    %v291 = vmul.f32 %v286, %v290
    %v292 = vmul.f32 %v285, %v291
    %vm293 = vcmp.eq.f32.partialorder %v285, inf
    %v294 = vsel %vm293, %v285, %v292
    %vm295 = vcmp.eq.f32.partialorder %v285, 0.0
    %v296 = vand.u32 %v285, 2147483648
    %v297 = vsel %vm295, %v296, %v294
    %v298 = vmax.f32 %v297, 1e-15
    %v299 = vrcp.pop %v298
    %v300 = vmul.f32 %v140, %v299
    %v301 = vmul.f32 %v281, %v300
    %vm302 = vcmp.gt.f32.partialorder %v298, %v140
    %v303 = vsel %vm302, 1, 0
    %vm304 = vcmp.eq.s32.totalorder %v303, 1
    %v305 = vsel %vm304, %v301, %v281
    %v306 = vmul.f32 %v257, %v257
    %v307 = vsel %vm190, %v306, 0.0
    %308 = vadd.xlane.f32.xlu0 %v307
    %v309 = vpop.xlane.xlu0 %308
    %v310 = vmul.f32 %v305, %v305
    %v311 = vsel %vm260, %v310, 0.0
    %312 = vadd.xlane.f32.xlu0 %v311
    %v313 = vpop.xlane.xlu0 %312
    %v314 = vperm.slane %v305, 0
    %v315 = vmul.f32 %v257, %v314
    %v316 = vsel %vm190, %v315, 0.0
    %317 = vadd.xlane.f32.xlu0 %v316
    %v318 = vpop.xlane.xlu0 %317
    %s319 = smul.f32 %s65, 2.0
    %v320 = vstv %s319
    %v321 = vmul.f32 %v320, %v318
    %v322 = vadd.f32 %v321, 1.0
    %v323 = vstv %s65
    %v324 = vmul.f32 %v323, %v313
    %v325 = vperm.slane %v324, 0
    %v326 = vadd.f32 %v322, %v325
    %v327 = vmul.f32 %v326, %v257
    %v328 = vmul.f32 %v323, %v309
    %v329 = vsub.f32 1.0, %v328
    %v330 = vmul.f32 %v329, %v314
    %v331 = vadd.f32 %v327, %v330
    %s332 = smul.f32 %s65, %s65
    %v333 = vstv %s332
    %v334 = vmul.f32 %v333, %v309
    %v335 = vperm.slane %v313, 0
    %v336 = vmul.f32 %v334, %v335
    %v337 = vadd.f32 %v322, %v336
    %v338 = vmax.f32 %v337, 1e-15
    %v339 = vrcp.pop %v338
    %v340 = vmul.f32 %v331, %v339
    %v341 = vmul.f32 %v340, %v340
    %v342 = vsel %vm190, %v341, 0.0
    %343 = vadd.xlane.f32.xlu0 %v342
    %v344 = vpop.xlane.xlu0 %343
    %v345 = vrsqrt.pop %v344
    %v346 = vmul.f32 %v345, %v344
    %v347 = vmul.f32 %v346, %v345
    %v348 = vmul.f32 0.5, %v347
    %v349 = vsub.f32 1.5, %v348
    %v350 = vmul.f32 %v345, %v349
    %v351 = vmul.f32 %v344, %v350
    %vm352 = vcmp.eq.f32.partialorder %v344, inf
    %v353 = vsel %vm352, %v344, %v351
    %vm354 = vcmp.eq.f32.partialorder %v344, 0.0
    %v355 = vand.u32 %v344, 2147483648
    %v356 = vsel %vm354, %v355, %v353
    %v357 = vmax.f32 %v356, 1e-15
    %v358 = vrcp.pop %v357
    %v359 = vmul.f32 %v140, %v358
    %v360 = vmul.f32 %v340, %v359
    %vm361 = vcmp.gt.f32.partialorder %v357, %v140
    %v362 = vsel %vm361, 1, 0
    %vm363 = vcmp.eq.s32.totalorder %v362, 1
    %v364 = vsel %vm363, %v360, %v340
    %v365 = vmul.f32 %v364, %v364
    %v366 = vsel %vm190, %v365, 0.0
    %367 = vadd.xlane.f32.xlu0 %v366
    %v368 = vpop.xlane.xlu0 %367
    %v369 = vrsqrt.pop %v368
    %v370 = vmul.f32 %v369, %v368
    %v371 = vmul.f32 %v370, %v369
    %v372 = vmul.f32 0.5, %v371
    %v373 = vsub.f32 1.5, %v372
    %v374 = vmul.f32 %v369, %v373
    %v375 = vmul.f32 %v368, %v374
    %vm376 = vcmp.eq.f32.partialorder %v368, inf
    %v377 = vsel %vm376, %v368, %v375
    %vm378 = vcmp.eq.f32.partialorder %v368, 0.0
    %v379 = vand.u32 %v368, 2147483648
    %v380 = vsel %vm378, %v379, %v377
    %v381 = vmax.f32 %v380, 1e-15
    %v382 = vmul.f32 %v99, %v381
    %v383 = vmax.f32 %v382, -0.9999999
    %v384 = vmin.f32 %v383, 0.9999999
    %v385 = vadd.f32 %v384, 1.0
    %v386 = vlog2.pop %v385
    %v387 = vmul.f32 %v386, 0.6931472
    %v388 = vsub.f32 1.0, %v384
    %v389 = vlog2.pop %v388
    %v390 = vmul.f32 %v389, 0.6931472
    %v391 = vsub.f32 %v387, %v390
    %v392 = vmul.f32 %v391, 0.5
    %v393 = vrcp.pop %v382
    %v394 = vmul.f32 %v392, %v393
    %v395 = vmul.f32 %v394, %v364
    %v396 = vld [vmem:[%s4] sm:$0xf]
    %v397 = vld [vmem:[%s4 + $0x4] sm:$0xf]
    %v398 = vld [vmem:[%s4 + $0x8] sm:$0xf]
    %v399 = vld [vmem:[%s4 + $0xc] sm:$0xf]
    %v400 = vpack.c.bf16 %v395, %v395
    %v405 = vunpack.c.l.b16 %v396
    %v406 = vunpack.c.l.b16 %v397
    %v407 = vunpack.c.l.b16 %v398
    %v408 = vunpack.c.l.b16 %v399
    %v409 = vpack.c.b16 %v406, %v405
    %v410 = vpack.c.b16 %v408, %v407
    %vm411 = vcmask 64512
    %v413 = vsel %vm411, %v409, 0
    %v416 = vsel %vm411, %v410, 0
    %vm418 = vcmask 1043456
    %v420 = vsel %vm418, %v400, 0
    %422 = vmatpush.bf16.msra.mxu0 0
    %423 = vmatpush.bf16.msra.mxu0 0
    %424 = vmatpush.bf16.msra.mxu0 0
    %425 = vmatpush.bf16.msra.mxu0 0
    %426 = vmatpush.bf16.msra.mxu0 0
    %427 = vmatpush.bf16.msra.mxu0 0
    %428 = vmatpush.bf16.msra.mxu0 0
    %429 = vmatpush.bf16.msra.mxu0 %v420
    %430 = vmatmul.bf16.gmra.mxu0 %v413
    %v431 = vpop.f32.mrf.mxu0
    %v432 = vadd.f32 0.0, %v431
    %v433 = vpop.f32.mrf.mxu0
    %v434 = vadd.f32 0.0, %v433
    %435 = vmatmul.bf16.gmra.mxu0 %v416
    %v436 = vpop.f32.mrf.mxu0
    %v437 = vadd.f32 0.0, %v436
    %v438 = vpop.f32.mrf.mxu0
    %v439 = vadd.f32 0.0, %v438
    %440 = vdwg.mxu0
    %v441 = vmul.f32 %v432, %v432
    %v442 = vmul.f32 %v434, %v434
    %v443 = vmul.f32 %v437, %v437
    %v444 = vmul.f32 %v439, %v439
    %v445 = vsel %vm190, %v441, 0.0
    %446 = vadd.xlane.f32.xlu0 %v445
    %v447 = vpop.xlane.xlu0 %446
    %v448 = vsel %vm190, %v442, 0.0
    %449 = vadd.xlane.f32.xlu0 %v448
    %v450 = vpop.xlane.xlu0 %449
    %v451 = vsel %vm190, %v443, 0.0
    %452 = vadd.xlane.f32.xlu0 %v451
    %v453 = vpop.xlane.xlu0 %452
    %v454 = vsel %vm190, %v444, 0.0
    %455 = vadd.xlane.f32.xlu0 %v454
    %v456 = vpop.xlane.xlu0 %455
    %v457 = vrsqrt.pop %v447
    %v458 = vmul.f32 %v457, %v447
    %v459 = vmul.f32 %v458, %v457
    %v460 = vmul.f32 0.5, %v459
    %v461 = vsub.f32 1.5, %v460
    %v462 = vmul.f32 %v457, %v461
    %v463 = vmul.f32 %v447, %v462
    %vm464 = vcmp.eq.f32.partialorder %v447, inf
    %v465 = vsel %vm464, %v447, %v463
    %vm466 = vcmp.eq.f32.partialorder %v447, 0.0
    %v467 = vand.u32 %v447, 2147483648
    %v468 = vsel %vm466, %v467, %v465
    %v469 = vrsqrt.pop %v450
    %v470 = vmul.f32 %v469, %v450
    %v471 = vmul.f32 %v470, %v469
    %v472 = vmul.f32 0.5, %v471
    %v473 = vsub.f32 1.5, %v472
    %v474 = vmul.f32 %v469, %v473
    %v475 = vmul.f32 %v450, %v474
    %vm476 = vcmp.eq.f32.partialorder %v450, inf
    %v477 = vsel %vm476, %v450, %v475
    %vm478 = vcmp.eq.f32.partialorder %v450, 0.0
    %v479 = vand.u32 %v450, 2147483648
    %v480 = vsel %vm478, %v479, %v477
    %v481 = vrsqrt.pop %v453
    %v482 = vmul.f32 %v481, %v453
    %v483 = vmul.f32 %v482, %v481
    %v484 = vmul.f32 0.5, %v483
    %v485 = vsub.f32 1.5, %v484
    %v486 = vmul.f32 %v481, %v485
    %v487 = vmul.f32 %v453, %v486
    %vm488 = vcmp.eq.f32.partialorder %v453, inf
    %v489 = vsel %vm488, %v453, %v487
    %vm490 = vcmp.eq.f32.partialorder %v453, 0.0
    %v491 = vand.u32 %v453, 2147483648
    %v492 = vsel %vm490, %v491, %v489
    %v493 = vrsqrt.pop %v456
    %v494 = vmul.f32 %v493, %v456
    %v495 = vmul.f32 %v494, %v493
    %v496 = vmul.f32 0.5, %v495
    %v497 = vsub.f32 1.5, %v496
    %v498 = vmul.f32 %v493, %v497
    %v499 = vmul.f32 %v456, %v498
    %vm500 = vcmp.eq.f32.partialorder %v456, inf
    %v501 = vsel %vm500, %v456, %v499
    %vm502 = vcmp.eq.f32.partialorder %v456, 0.0
    %v503 = vand.u32 %v456, 2147483648
    %v504 = vsel %vm502, %v503, %v501
    %v505 = vmax.f32 %v468, 1e-15
    %v506 = vmax.f32 %v480, 1e-15
    %v507 = vmax.f32 %v492, 1e-15
    %v508 = vmax.f32 %v504, 1e-15
    %v509 = vstv %s80
    %v510 = vrcp.pop %v509
    %v511 = vmul.f32 %v509, %v510
    %v512 = vsub.f32 1.0, %v511
    %v513 = vmul.f32 %v510, %v512
    %v514 = vadd.f32 %v510, %v513
    %vm515 = vweird.f32 %v509
    %vm516 = vweird.f32 %v510
    %vm517 = vmor %vm515, %vm516
    %v518 = vsel %vm517, %v510, %v514
    %v519 = vand.u32 2147483647, %v509
    %vm520 = vcmp.eq.f32.partialorder %v519, 8.507059e+37
    %v521 = vand.u32 %v509, 2147483648
    %v522 = vor.u32 1.1754944e-38, %v521
    %v523 = vsel %vm520, %v522, %v518
    %s524 = vtos %v523
    %s525 = smul.f32 3.106303, %s524
    %v526 = vrcp.pop %v505
    %v527 = vrcp.pop %v506
    %v528 = vrcp.pop %v507
    %v529 = vrcp.pop %v508
    %v530 = vstv %s525
    %v531 = vmul.f32 %v530, %v526
    %v532 = vmul.f32 %v530, %v527
    %v533 = vmul.f32 %v530, %v528
    %v534 = vmul.f32 %v530, %v529
    %v535 = vmul.f32 %v432, %v531
    %v536 = vmul.f32 %v434, %v532
    %v537 = vmul.f32 %v437, %v533
    %v538 = vmul.f32 %v439, %v534
    %vm539 = vcmp.gt.f32.partialorder %v505, %v530
    %vm540 = vcmp.gt.f32.partialorder %v506, %v530
    %vm541 = vcmp.gt.f32.partialorder %v507, %v530
    %vm542 = vcmp.gt.f32.partialorder %v508, %v530
    %v543 = vsel %vm539, 1, 0
    %v544 = vsel %vm540, 1, 0
    %v545 = vsel %vm541, 1, 0
    %v546 = vsel %vm542, 1, 0
    %vm547 = vcmp.eq.s32.totalorder %v543, 1
    %vm548 = vcmp.eq.s32.totalorder %v544, 1
    %vm549 = vcmp.eq.s32.totalorder %v545, 1
    %vm550 = vcmp.eq.s32.totalorder %v546, 1
    %v551 = vsel %vm547, %v535, %v432
    %v552 = vsel %vm548, %v536, %v434
    %v553 = vsel %vm549, %v537, %v437
    %v554 = vsel %vm550, %v538, %v439
    %v555 = vmax.f32 %v551, 0.0
    %v556 = vmax.f32 %v552, 0.0
    %v557 = vmax.f32 %v553, 0.0
    %v558 = vmax.f32 %v554, 0.0
    %v559 = vld [vmem:[%s5] sm:$0x1]
    %v560 = vsel %vm190, %v556, -inf
    %v561 = vrot.slane %v560, 4
    %v562 = vmax.f32 %v560, %v561
    %v563 = vrot.slane %v562, 2
    %v564 = vmax.f32 %v562, %v563
    %v565 = vrot.slane %v564, 1
    %v566 = vmax.f32 %v564, %v565
    %v567 = vmul.f32 %v566, %v559
    %v568 = vsel %vm260, %v567, 0.0
    %569 = vadd.xlane.f32.xlu0 %v568
    %v570 = vpop.xlane.xlu0 %569
    %v571 = vrot.slane %v570, 4
    %v572 = vadd.f32 %v570, %v571
    %v573 = vrot.slane %v572, 2
    %v574 = vadd.f32 %v572, %v573
    %v575 = vrot.slane %v574, 1
    %v576 = vadd.f32 %v574, %v575
    %s577 = vtos %v576
    %v578 = vsel %vm190, %v557, -inf
    %v579 = vrot.slane %v578, 4
    %v580 = vmax.f32 %v578, %v579
    %v581 = vrot.slane %v580, 2
    %v582 = vmax.f32 %v580, %v581
    %v583 = vrot.slane %v582, 1
    %v584 = vmax.f32 %v582, %v583
    %v585 = vmul.f32 %v584, %v559
    %v586 = vsel %vm260, %v585, 0.0
    %587 = vadd.xlane.f32.xlu0 %v586
    %v588 = vpop.xlane.xlu0 %587
    %v589 = vrot.slane %v588, 4
    %v590 = vadd.f32 %v588, %v589
    %v591 = vrot.slane %v590, 2
    %v592 = vadd.f32 %v590, %v591
    %v593 = vrot.slane %v592, 1
    %v594 = vadd.f32 %v592, %v593
    %s595 = vtos %v594
    %v596 = vsel %vm190, %v558, -inf
    %v597 = vrot.slane %v596, 4
    %v598 = vmax.f32 %v596, %v597
    %v599 = vrot.slane %v598, 2
    %v600 = vmax.f32 %v598, %v599
    %v601 = vrot.slane %v600, 1
    %v602 = vmax.f32 %v600, %v601
    %v603 = vmul.f32 %v602, %v559
    %v604 = vsel %vm260, %v603, 0.0
    %605 = vadd.xlane.f32.xlu0 %v604
    %v606 = vpop.xlane.xlu0 %605
    %v607 = vrot.slane %v606, 4
    %v608 = vadd.f32 %v606, %v607
    %v609 = vrot.slane %v608, 2
    %v610 = vadd.f32 %v608, %v609
    %v611 = vrot.slane %v610, 1
    %v612 = vadd.f32 %v610, %v611
    %s613 = vtos %v612
    %s614 = smax.f32 %s577, %s595
    %s615 = smax.f32 %s614, %s613
    %s616 = ssub.f32 %s577, %s615
    %v617 = vstv %s616
    %v618 = vmul.f32 %v617, 1.442695
    %v619 = vpow.pop %v618
    %s620 = vtos %v619
    %s621 = ssub.f32 %s595, %s615
    %v622 = vstv %s621
    %v623 = vmul.f32 %v622, 1.442695
    %v624 = vpow.pop %v623
    %s625 = vtos %v624
    %s626 = ssub.f32 %s613, %s615
    %v627 = vstv %s626
    %v628 = vmul.f32 %v627, 1.442695
    %v629 = vpow.pop %v628
    %s630 = vtos %v629
    %s631 = sadd.f32 %s620, %s625
    %s632 = sadd.f32 %s631, %s630
    %v633 = vstv %s632
    %v634 = vrcp.pop %v633
    %v635 = vmul.f32 %v633, %v634
    %v636 = vsub.f32 1.0, %v635
    %v637 = vmul.f32 %v634, %v636
    %v638 = vadd.f32 %v634, %v637
    %vm639 = vweird.f32 %v633
    %vm640 = vweird.f32 %v634
    %vm641 = vmor %vm639, %vm640
    %v642 = vsel %vm641, %v634, %v638
    %v643 = vand.u32 2147483647, %v633
    %vm644 = vcmp.eq.f32.partialorder %v643, 8.507059e+37
    %v645 = vand.u32 %v633, 2147483648
    %v646 = vor.u32 1.1754944e-38, %v645
    %v647 = vsel %vm644, %v646, %v642
    %s648 = vtos %v647
    %s649 = smul.f32 %s620, %s648
    %v650 = vstv %s649
    %v651 = vmul.f32 %v556, %v650
    %v652 = vadd.f32 %v651, 0.0
    %v653 = vstv %s632
    %v654 = vrcp.pop %v653
    %v655 = vmul.f32 %v653, %v654
    %v656 = vsub.f32 1.0, %v655
    %v657 = vmul.f32 %v654, %v656
    %v658 = vadd.f32 %v654, %v657
    %vm659 = vweird.f32 %v653
    %vm660 = vweird.f32 %v654
    %vm661 = vmor %vm659, %vm660
    %v662 = vsel %vm661, %v654, %v658
    %v663 = vand.u32 2147483647, %v653
    %vm664 = vcmp.eq.f32.partialorder %v663, 8.507059e+37
    %v665 = vand.u32 %v653, 2147483648
    %v666 = vor.u32 1.1754944e-38, %v665
    %v667 = vsel %vm664, %v666, %v662
    %s668 = vtos %v667
    %s669 = smul.f32 %s625, %s668
    %v670 = vstv %s669
    %v671 = vmul.f32 %v557, %v670
    %v672 = vadd.f32 %v652, %v671
    %v673 = vstv %s632
    %v674 = vrcp.pop %v673
    %v675 = vmul.f32 %v673, %v674
    %v676 = vsub.f32 1.0, %v675
    %v677 = vmul.f32 %v674, %v676
    %v678 = vadd.f32 %v674, %v677
    %vm679 = vweird.f32 %v673
    %vm680 = vweird.f32 %v674
    %vm681 = vmor %vm679, %vm680
    %v682 = vsel %vm681, %v674, %v678
    %v683 = vand.u32 2147483647, %v673
    %vm684 = vcmp.eq.f32.partialorder %v683, 8.507059e+37
    %v685 = vand.u32 %v673, 2147483648
    %v686 = vor.u32 1.1754944e-38, %v685
    %v687 = vsel %vm684, %v686, %v682
    %s688 = vtos %v687
    %s689 = smul.f32 %s630, %s688
    %v690 = vstv %s689
    %v691 = vmul.f32 %v558, %v690
    %v692 = vadd.f32 %v672, %v691
    %v693 = vmul.f32 %v692, %v692
    %v694 = vsel %vm190, %v693, 0.0
    %695 = vadd.xlane.f32.xlu0 %v694
    %v696 = vpop.xlane.xlu0 %695
    %v697 = vrsqrt.pop %v696
    %v698 = vmul.f32 %v697, %v696
    %v699 = vmul.f32 %v698, %v697
    %v700 = vmul.f32 0.5, %v699
    %v701 = vsub.f32 1.5, %v700
    %v702 = vmul.f32 %v697, %v701
    %v703 = vmul.f32 %v696, %v702
    %vm704 = vcmp.eq.f32.partialorder %v696, inf
    %v705 = vsel %vm704, %v696, %v703
    %vm706 = vcmp.eq.f32.partialorder %v696, 0.0
    %v707 = vand.u32 %v696, 2147483648
    %v708 = vsel %vm706, %v707, %v705
    %v709 = vmax.f32 %v708, 1e-15
    %v710 = vrcp.pop %v709
    %v711 = vmul.f32 %v530, %v710
    %v712 = vmul.f32 %v692, %v711
    %vm713 = vcmp.gt.f32.partialorder %v709, %v530
    %v714 = vsel %vm713, 1, 0
    %vm715 = vcmp.eq.s32.totalorder %v714, 1
    %v716 = vsel %vm715, %v712, %v692
    %v717 = vld [vmem:[%s6] sm:$0x1]
    %v718 = vsel %vm190, %v555, -inf
    %v719 = vrot.slane %v718, 4
    %v720 = vmax.f32 %v718, %v719
    %v721 = vrot.slane %v720, 2
    %v722 = vmax.f32 %v720, %v721
    %v723 = vrot.slane %v722, 1
    %v724 = vmax.f32 %v722, %v723
    %v725 = vmul.f32 %v724, %v717
    %v726 = vsel %vm260, %v725, 0.0
    %727 = vadd.xlane.f32.xlu0 %v726
    %v728 = vpop.xlane.xlu0 %727
    %v729 = vrot.slane %v728, 4
    %v730 = vadd.f32 %v728, %v729
    %v731 = vrot.slane %v730, 2
    %v732 = vadd.f32 %v730, %v731
    %v733 = vrot.slane %v732, 1
    %v734 = vadd.f32 %v732, %v733
    %s735 = vtos %v734
    %v736 = vsel %vm190, %v716, -inf
    %v737 = vrot.slane %v736, 4
    %v738 = vmax.f32 %v736, %v737
    %v739 = vrot.slane %v738, 2
    %v740 = vmax.f32 %v738, %v739
    %v741 = vrot.slane %v740, 1
    %v742 = vmax.f32 %v740, %v741
    %v743 = vmul.f32 %v742, %v717
    %v744 = vsel %vm260, %v743, 0.0
    %745 = vadd.xlane.f32.xlu0 %v744
    %v746 = vpop.xlane.xlu0 %745
    %v747 = vrot.slane %v746, 4
    %v748 = vadd.f32 %v746, %v747
    %v749 = vrot.slane %v748, 2
    %v750 = vadd.f32 %v748, %v749
    %v751 = vrot.slane %v750, 1
    %v752 = vadd.f32 %v750, %v751
    %s753 = vtos %v752
    %s754 = smax.f32 %s735, %s753
    %s755 = ssub.f32 %s735, %s754
    %v756 = vstv %s755
    %v757 = vmul.f32 %v756, 1.442695
    %v758 = vpow.pop %v757
    %s759 = vtos %v758
    %s760 = ssub.f32 %s753, %s754
    %v761 = vstv %s760
    %v762 = vmul.f32 %v761, 1.442695
    %v763 = vpow.pop %v762
    %s764 = vtos %v763
    %s765 = sadd.f32 %s759, %s764
    %v766 = vstv %s765
    %v767 = vrcp.pop %v766
    %v768 = vmul.f32 %v766, %v767
    %v769 = vsub.f32 1.0, %v768
    %v770 = vmul.f32 %v767, %v769
    %v771 = vadd.f32 %v767, %v770
    %vm772 = vweird.f32 %v766
    %vm773 = vweird.f32 %v767
    %vm774 = vmor %vm772, %vm773
    %v775 = vsel %vm774, %v767, %v771
    %v776 = vand.u32 2147483647, %v766
    %vm777 = vcmp.eq.f32.partialorder %v776, 8.507059e+37
    %v778 = vand.u32 %v766, 2147483648
    %v779 = vor.u32 1.1754944e-38, %v778
    %v780 = vsel %vm777, %v779, %v775
    %s781 = vtos %v780
    %s782 = smul.f32 %s759, %s781
    %v783 = vstv %s782
    %v784 = vmul.f32 %v555, %v783
    %v785 = vstv %s765
    %v786 = vrcp.pop %v785
    %v787 = vmul.f32 %v785, %v786
    %v788 = vsub.f32 1.0, %v787
    %v789 = vmul.f32 %v786, %v788
    %v790 = vadd.f32 %v786, %v789
    %vm791 = vweird.f32 %v785
    %vm792 = vweird.f32 %v786
    %vm793 = vmor %vm791, %vm792
    %v794 = vsel %vm793, %v786, %v790
    %v795 = vand.u32 2147483647, %v785
    %vm796 = vcmp.eq.f32.partialorder %v795, 8.507059e+37
    %v797 = vand.u32 %v785, 2147483648
    %v798 = vor.u32 1.1754944e-38, %v797
    %v799 = vsel %vm796, %v798, %v794
    %s800 = vtos %v799
    %s801 = smul.f32 %s764, %s800
    %v802 = vstv %s801
    %v803 = vmul.f32 %v716, %v802
    %v804 = vadd.f32 %v784, %v803
    %v805 = vmul.f32 %v804, %v804
    %v806 = vsel %vm190, %v805, 0.0
    %807 = vadd.xlane.f32.xlu0 %v806
    %v808 = vpop.xlane.xlu0 %807
    %v809 = vrsqrt.pop %v808
    %v810 = vmul.f32 %v809, %v808
    %v811 = vmul.f32 %v810, %v809
    %v812 = vmul.f32 0.5, %v811
    %v813 = vsub.f32 1.5, %v812
    %v814 = vmul.f32 %v809, %v813
    %v815 = vmul.f32 %v808, %v814
    %vm816 = vcmp.eq.f32.partialorder %v808, inf
    %v817 = vsel %vm816, %v808, %v815
    %vm818 = vcmp.eq.f32.partialorder %v808, 0.0
    %v819 = vand.u32 %v808, 2147483648
    %v820 = vsel %vm818, %v819, %v817
    %v821 = vmax.f32 %v820, 1e-15
    %v822 = vrcp.pop %v821
    %v823 = vmul.f32 %v530, %v822
    %v824 = vmul.f32 %v804, %v823
    %vm825 = vcmp.gt.f32.partialorder %v821, %v530
    %v826 = vsel %vm825, 1, 0
    %vm827 = vcmp.eq.s32.totalorder %v826, 1
    %v828 = vsel %vm827, %v824, %v804
    %v829 = vld [vmem:[#allocation6] sm:$0xff]
    %v830 = vld [vmem:[#allocation6 + $0x8] sm:$0xff]
    %v831 = vld [vmem:[#allocation6 + $0x10] sm:$0xff]
    %v832 = vld [vmem:[#allocation6 + $0x18] sm:$0xff]
    %v833 = vld [vmem:[%s8] sm:$0x1]
    %v835 = vperm.slane %v833, 0
    %v838 = vsel %vm190, %v828, 0
    %840 = vmatpush.msra.mxu0 0.0
    %841 = vmatpush.msra.mxu0 0.0
    %842 = vmatpush.msra.mxu0 0.0
    %843 = vmatpush.msra.mxu0 0.0
    %844 = vmatpush.msra.mxu0 0.0
    %845 = vmatpush.msra.mxu0 0.0
    %846 = vmatpush.msra.mxu0 0.0
    %847 = vmatpush.msra.mxu0 0.0
    %848 = vmatpush.msra.mxu0 0.0
    %849 = vmatpush.msra.mxu0 0.0
    %850 = vmatpush.msra.mxu0 0.0
    %851 = vmatpush.msra.mxu0 0.0
    %852 = vmatpush.msra.mxu0 %v832
    %853 = vmatpush.msra.mxu0 %v831
    %854 = vmatpush.msra.mxu0 %v830
    %855 = vmatpush.msra.mxu0 %v829
    %856 = vmatmul.f32.gmra.mxu0 %v838
    %v857 = vpop.f32.mrf.mxu0
    %v858 = vadd.f32 %v835, %v857
    %859 = vdwg.mxu0
    %860 = vst [vmem:[#allocation8] sm:$0xff] %v858
    // Predicated region
    $region46: #{tpu_custom_call.1} parent=1 // pred_check
      _
    $region47: #{tpu_custom_call.1} parent=1 // pred_check_branch
      %862 = sbr.rel (0) target = $region49
    $region48: #{tpu_custom_call.1} parent=1 // pred_region
      %864 = vsyncadd [#allocation5], 0
      %s866 = sshll.u32 [#allocation8], 4
      %s867 = int_to_ptr.vmem [resolvable:$true] %s866
      %s868 = sshll.u32 %s9, 4
      %s869 = int_to_ptr.hbm [resolvable:$true] %s868
      %871 = dma.vmem_to_hbm [thread:$0]  %s867, 128, %s869, [#allocation5]
    $region49: #{tpu_custom_call.1} parent=1 // pred_fallthru
      _
    // Predicated region
    $region50: #{tpu_custom_call.1} parent=1 // pred_check
      _
    $region51: #{tpu_custom_call.1} parent=1 // pred_check_branch
      %873 = sbr.rel (0) target = $region53
    $region52: #{tpu_custom_call.1} parent=1 // pred_region
      %875 = dma.done [#allocation5], 128
    $region53: #{tpu_custom_call.1} parent=1 // pred_fallthru
      _
    %876 = vsyncpa [#allocation4], 1
    %877 = vsyncpa [#allocation7], 1
    %878 = vsyncpa [#allocation5], 1

</llo_original>
